<compile_context>
chip_gen: v7x
topology: tpu7x:2x2x1
jax: 0.10.0
libtpu: 0.0.40
codegen_flags: <defaults>
</compile_context>

<pallas_src>
import functools

import jax
import jax.numpy as jnp
from jax.experimental import pallas as pl
from jax.experimental.pallas import tpu as pltpu


_HIGHEST = jax.lax.Precision.HIGHEST


def _round_up(n, m):
    return ((n + m - 1) // m) * m


def _softplus(x):
    # Matches torch.nn.Softplus(beta=1, threshold=20).
    return jnp.where(x > 20.0, x, jnp.log1p(jnp.exp(jnp.minimum(x, 20.0))))


def dynamic_decoder_kernel(state_ref, ctx_ref,
                           w1_ref, b1_ref, w2_ref, b2_ref, wp_ref, bp_ref,
                           out_ref, *, velocity_const):
    # Lane-major layout: agents on the last (lane) axis.
    #   state_ref rows: [noise0, noise1, xprev0, xprev1, dx0, dx1]   (6, blk)
    #   ctx_ref:                                                     (D, blk)
    #   out_ref rows:  [x0, x1, mu0, mu1, s00, s01, s10, s11]        (8, blk)
    ctx = ctx_ref[...]

    # MLP layer 0: Linear + Softplus   -> (H1p, blk)
    h1 = _softplus(
        jnp.dot(w1_ref[...], ctx,
                preferred_element_type=jnp.float32, precision=_HIGHEST)
        + b1_ref[...])
    # MLP layer 1: Linear + Tanh       -> (H2p, blk)
    h2 = jnp.tanh(
        jnp.dot(w2_ref[...], h1,
                preferred_element_type=jnp.float32, precision=_HIGHEST)
        + b2_ref[...])
    # Projection: Linear(H2 -> 6); rows 6..7 are zero padding.      -> (8, blk)
    pred = (jnp.dot(wp_ref[...], h2,
                    preferred_element_type=jnp.float32, precision=_HIGHEST)
            + bp_ref[...])

    st = state_ref[...]
    n0 = st[0:1, :]
    n1 = st[1:2, :]
    # mu = x_prev + velocity_const * dx + mu_hat                     (2, blk)
    mu = st[2:4, :] + velocity_const * st[4:6, :] + pred[0:2, :]
    mu0 = mu[0:1, :]
    mu1 = mu[1:2, :]

    s00 = pred[2:3, :]
    s01 = pred[3:4, :]
    s10 = pred[4:5, :]
    s11 = pred[5:6, :]

    # sigma = expm(sigma_hat + sigma_hat^T); closed form for a symmetric 2x2:
    #   exp(apd) * [cosh(d) I + sinh(d)/d * [[amd, b], [b, -amd]]]
    # computed via ep = exp(apd + d), em = exp(apd - d).
    b = s01 + s10
    apd = s00 + s11
    amd = s00 - s11
    delta2 = amd * amd + b * b
    delta = jnp.sqrt(delta2)
    ep = jnp.exp(apd + delta)
    em = jnp.exp(apd - delta)
    cosh_scale = 0.5 * (ep + em)      # exp(apd) * cosh(delta)
    sinh_scale = 0.5 * (ep - em)      # exp(apd) * sinh(delta)

    small = delta < 1e-3
    safe = jnp.where(small, 1.0, delta)
    # exp(apd) * sinh(d)/d ; as d -> 0 this limits to exp(apd) ~= cosh_scale.
    var1 = jnp.where(small, cosh_scale, sinh_scale / safe)
    var2 = amd * var1

    sig00 = cosh_scale + var2
    sig01 = b * var1                  # == sig10
    sig11 = cosh_scale - var2

    # x = sigma @ noise + mu
    x0 = sig00 * n0 + sig01 * n1 + mu0
    x1 = sig01 * n0 + sig11 * n1 + mu1

    # Lane-dense row stores into the fused output slab.
    out_ref[0:1, :] = x0
    out_ref[1:2, :] = x1
    out_ref[2:4, :] = mu
    out_ref[4:5, :] = sig00
    out_ref[5:6, :] = sig01
    out_ref[6:7, :] = sig01
    out_ref[7:8, :] = sig11


def prepare_decoder_params(params):
    """Pad + transpose MLP parameters ONCE (hoisted out of the forward call)."""
    w1, b1, w2, b2, wp, bp = params          # w: (in, out), b: (1, out)
    D, H1 = w1.shape
    H2 = w2.shape[1]
    H1p = _round_up(H1, 64)
    H2p = _round_up(H2, 64)
    Pp = 8

    def pad_t(w, rows, cols):                # transpose to (out, in), then pad
        wt = w.T
        return jnp.pad(wt, ((0, rows - wt.shape[0]), (0, cols - wt.shape[1])))

    # Padding is mathematically exact: padded h1 rows are softplus(0)=log(2),
    # but every downstream weight column that would consume them is zero.
    return dict(
        w1t=pad_t(w1, H1p, D),               # (H1p, D)
        b1t=pad_t(b1, H1p, 1),               # (H1p, 1)
        w2t=pad_t(w2, H2p, H1p),             # (H2p, H1p)
        b2t=pad_t(b2, H2p, 1),               # (H2p, 1)
        wpt=pad_t(wp, Pp, H2p),              # (8, H2p)
        bpt=pad_t(bp, Pp, 1),                # (8, 1)
        D=D, H1p=H1p, H2p=H2p,
    )


def _choose_blocking(num_agents, cap=512):
    """A_pad multiple of 128; single block when small, <=cap blocks when large."""
    a_pad = _round_up(max(num_agents, 1), 128)
    if a_pad <= cap:
        return a_pad, a_pad
    n_blocks = -(-a_pad // cap)
    block_a = _round_up(-(-a_pad // n_blocks), 128)
    return block_a * n_blocks, block_a


def dynamic_decoder_forward(prepared, source_noise, context_enc, x_prev, dx,
                            *, velocity_const, block_cap=512):
    A, D = context_enc.shape
    H1p, H2p = prepared["H1p"], prepared["H2p"]
    assert D == prepared["D"]

    A_pad, block_a = _choose_blocking(A, block_cap)
    grid = (A_pad // block_a,)

    # Lane-major slabs: agents on the last axis, padded to a multiple of 128.
    state = jnp.concatenate([source_noise, x_prev, dx], axis=1).T      # (6, A)
    state = jnp.pad(state, ((0, 0), (0, A_pad - A)))
    ctx_t = jnp.pad(context_enc.T, ((0, 0), (0, A_pad - A)))           # (D, A_pad)

    kernel = functools.partial(dynamic_decoder_kernel,
                               velocity_const=float(velocity_const))

    def full_spec(shape):
        return pl.BlockSpec(shape, lambda i: (0, 0))

    cost = pl.CostEstimate(
        flops=2 * A_pad * (D * H1p + H1p * H2p + H2p * 8) + 50 * A_pad,
        # softplus = exp + log1p (2/elem), tanh = 1/elem,
        # sigma path = 2 exp + sqrt + div per agent.
        transcendentals=A_pad * (2 * H1p + H2p + 4),
        bytes_accessed=4 * (A_pad * (D + 6 + 8)
                            + H1p * (D + 1) + H2p * (H1p + 1) + 8 * (H2p + 1)),
    )

    fused_out = pl.pallas_call(
        kernel,
        out_shape=jax.ShapeDtypeStruct((8, A_pad), jnp.float32),
        grid_spec=pltpu.PrefetchScalarGridSpec(
            num_scalar_prefetch=0,
            grid=grid,
            in_specs=[
                pl.BlockSpec((6, block_a), lambda i: (0, i)),   # [noise, x_prev, dx]
                pl.BlockSpec((D, block_a), lambda i: (0, i)),   # context (transposed)
                full_spec((H1p, D)),       # W1^T
                full_spec((H1p, 1)),       # b1
                full_spec((H2p, H1p)),     # W2^T
                full_spec((H2p, 1)),       # b2
                full_spec((8, H2p)),       # Wp^T
                full_spec((8, 1)),         # bp
            ],
            out_specs=pl.BlockSpec((8, block_a), lambda i: (0, i)),
        ),
        compiler_params=pltpu.CompilerParams(
            dimension_semantics=("parallel",)),
        cost_estimate=cost,
    )(state, ctx_t,
      prepared["w1t"], prepared["b1t"], prepared["w2t"], prepared["b2t"],
      prepared["wpt"], prepared["bpt"])

    out = fused_out[:, :A]
    x = out[0:2, :].T
    mu = out[2:4, :].T
    sigma = out[4:8, :].T.reshape(A, 2, 2)
    return x, mu, sigma


def _reference_forward(params, source_noise, context_enc, x_prev, dx, velocity_const):
    """Pure-JAX reference mirroring the PyTorch module (acceptance oracle)."""
    w1, b1, w2, b2, wp, bp = params
    h1 = _softplus(jnp.dot(context_enc, w1, precision=_HIGHEST) + b1)
    h2 = jnp.tanh(jnp.dot(h1, w2, precision=_HIGHEST) + b2)
    pred = jnp.dot(h2, wp, precision=_HIGHEST) + bp
    mu_hat = pred[:, :2]
    sh = pred[:, 2:].reshape(-1, 2, 2)
    mu = x_prev + velocity_const * dx + mu_hat
    b = sh[:, 0, 1] + sh[:, 1, 0]
    apd = sh[:, 0, 0] + sh[:, 1, 1]
    amd = sh[:, 0, 0] - sh[:, 1, 1]
    delta = jnp.sqrt(amd ** 2 + b ** 2)
    safe = jnp.where(delta < 1e-3, 1.0, delta)
    var1 = jnp.where(delta < 1e-3, 1.0, jnp.sinh(safe) / safe)
    cosh = jnp.cosh(delta)
    var2 = amd * var1
    scale = jnp.exp(apd)
    sigma = jnp.stack([
        jnp.stack([cosh + var2, b * var1], axis=-1),
        jnp.stack([b * var1, cosh - var2], axis=-1),
    ], axis=-2) * scale[:, None, None]
    x = jnp.einsum("aij,aj->ai", sigma, source_noise) + mu
    return x, mu, sigma


if __name__ == "__main__":
    # Small shapes consistent with the module's forward:
    #   A agents, context feature dim D, mlp_features=(50, 50).
    A = 64
    D = 32
    H1, H2 = 50, 50
    velocity_const = 0.5

    key = jax.random.PRNGKey(0)
    ks = jax.random.split(key, 10)

    # Deterministic synthetic parameters (nn.Linear shapes, stored transposed as (in, out)).
    def init_linear(kw, kb, fan_in, fan_out):
        bound = 1.0 / (fan_in ** 0.5)
        w = jax.random.uniform(kw, (fan_in, fan_out), jnp.float32, -bound, bound)
        b = jax.random.uniform(kb, (1, fan_out), jnp.float32, -bound, bound)
        return w, b

    w1, b1 = init_linear(ks[0], ks[1], D, H1)
    w2, b2 = init_linear(ks[2], ks[3], H1, H2)
    wp, bp = init_linear(ks[4], ks[5], H2, 6)
    params = (w1, b1, w2, b2, wp, bp)

    source_noise = jax.random.normal(ks[6], (A, 2), jnp.float32)
    context_enc = jax.random.normal(ks[7], (A, D), jnp.float32)
    x_prev = jax.random.normal(ks[8], (A, 2), jnp.float32)
    dx = jax.random.normal(ks[9], (A, 2), jnp.float32)

    # One-time parameter preparation (hoisted out of the per-step wrapper).
    prepared = prepare_decoder_params(params)
    jax.block_until_ready(prepared)

    x, mu, sigma = dynamic_decoder_forward(
        prepared, source_noise, context_enc, x_prev, dx,
        velocity_const=velocity_const)
    jax.block_until_ready((x, mu, sigma))

    # Sanity check against a pure-JAX reference of the module's math.
    x_r, mu_r, sigma_r = _reference_forward(
        params, source_noise, context_enc, x_prev, dx, velocity_const)
    assert x.shape == (A, 2) and mu.shape == (A, 2) and sigma.shape == (A, 2, 2)
    assert jnp.allclose(x, x_r, atol=2e-3, rtol=2e-3)
    assert jnp.allclose(mu, mu_r, atol=2e-3, rtol=2e-3)
    assert jnp.allclose(sigma, sigma_r, atol=2e-3, rtol=2e-3)

    print("KERNEL_OK")
</pallas_src>

<mosaic_0001>
module attributes {stable_mosaic.version = 11 : i64} {
  func.func @dynamic_decoder_kernel(%arg0: i32, %arg1: memref<6x128xf32, #tpu.memory_space<vmem>>, %arg2: memref<32x128xf32, #tpu.memory_space<vmem>>, %arg3: memref<64x32xf32, #tpu.memory_space<vmem>>, %arg4: memref<64x1xf32, #tpu.memory_space<vmem>>, %arg5: memref<64x64xf32, #tpu.memory_space<vmem>>, %arg6: memref<64x1xf32, #tpu.memory_space<vmem>>, %arg7: memref<8x64xf32, #tpu.memory_space<vmem>>, %arg8: memref<8x1xf32, #tpu.memory_space<vmem>>, %arg9: memref<8x128xf32, #tpu.memory_space<vmem>>) attributes {dimension_semantics = [#tpu.dimension_semantics<parallel>], iteration_bounds = array<i64: 1>, scalar_prefetch = 0 : i64, scratch_operands = 0 : i64, tpu.core_type = #tpu.core_type<tc>, window_params = [{transform_indices = @transform_0, window_bounds = array<i64: 6, 128>}, {transform_indices = @transform_1, window_bounds = array<i64: 32, 128>}, {pipeline_mode = #tpu.pipeline_mode<synchronous>, transform_indices = @transform_2, window_bounds = array<i64: 64, 32>}, {pipeline_mode = #tpu.pipeline_mode<synchronous>, transform_indices = @transform_3, window_bounds = array<i64: 64, 1>}, {pipeline_mode = #tpu.pipeline_mode<synchronous>, transform_indices = @transform_4, window_bounds = array<i64: 64, 64>}, {pipeline_mode = #tpu.pipeline_mode<synchronous>, transform_indices = @transform_5, window_bounds = array<i64: 64, 1>}, {pipeline_mode = #tpu.pipeline_mode<synchronous>, transform_indices = @transform_6, window_bounds = array<i64: 8, 64>}, {pipeline_mode = #tpu.pipeline_mode<synchronous>, transform_indices = @transform_7, window_bounds = array<i64: 8, 1>}, {transform_indices = @transform_8, window_bounds = array<i64: 8, 128>}]} {
    %c0 = arith.constant 0 : index
    %c0_0 = arith.constant 0 : index
    %0 = vector.load %arg2[%c0, %c0_0] : memref<32x128xf32, #tpu.memory_space<vmem>>, vector<32x128xf32>
    %c0_1 = arith.constant 0 : index
    %c0_2 = arith.constant 0 : index
    %1 = vector.load %arg3[%c0_1, %c0_2] : memref<64x32xf32, #tpu.memory_space<vmem>>, vector<64x32xf32>
    %cst = arith.constant dense<0.000000e+00> : vector<64x128xf32>
    %2 = tpu.matmul %1, %0, %cst {dimension_numbers = #tpu.dot_dimension_numbers<[1], [0], [0], [1], [0, 0, 1, 1], [], []>, precision = #tpu.contract_precision<fp32>} : vector<64x32xf32>, vector<32x128xf32>, vector<64x128xf32> -> vector<64x128xf32>
    %c0_3 = arith.constant 0 : index
    %c0_4 = arith.constant 0 : index
    %3 = vector.load %arg4[%c0_3, %c0_4] : memref<64x1xf32, #tpu.memory_space<vmem>>, vector<64x1xf32>
    %4 = vector.broadcast %3 : vector<64x1xf32> to vector<64x128xf32>
    %5 = arith.addf %2, %4 : vector<64x128xf32>
    %cst_5 = arith.constant 2.000000e+01 : f32
    %6 = vector.broadcast %cst_5 : f32 to vector<64x128xf32>
    %7 = arith.cmpf ogt, %5, %6 : vector<64x128xf32>
    %cst_6 = arith.constant 2.000000e+01 : f32
    %8 = vector.broadcast %cst_6 : f32 to vector<64x128xf32>
    %9 = arith.minimumf %5, %8 : vector<64x128xf32>
    %10 = math.exp %9 : vector<64x128xf32>
    %11 = math.log1p %10 : vector<64x128xf32>
    %12 = arith.select %7, %5, %11 : vector<64x128xi1>, vector<64x128xf32>
    %c0_7 = arith.constant 0 : index
    %c0_8 = arith.constant 0 : index
    %13 = vector.load %arg5[%c0_7, %c0_8] : memref<64x64xf32, #tpu.memory_space<vmem>>, vector<64x64xf32>
    %cst_9 = arith.constant dense<0.000000e+00> : vector<64x128xf32>
    %14 = tpu.matmul %13, %12, %cst_9 {dimension_numbers = #tpu.dot_dimension_numbers<[1], [0], [0], [1], [0, 0, 1, 1], [], []>, precision = #tpu.contract_precision<fp32>} : vector<64x64xf32>, vector<64x128xf32>, vector<64x128xf32> -> vector<64x128xf32>
    %c0_10 = arith.constant 0 : index
    %c0_11 = arith.constant 0 : index
    %15 = vector.load %arg6[%c0_10, %c0_11] : memref<64x1xf32, #tpu.memory_space<vmem>>, vector<64x1xf32>
    %16 = vector.broadcast %15 : vector<64x1xf32> to vector<64x128xf32>
    %17 = arith.addf %14, %16 : vector<64x128xf32>
    %18 = math.tanh %17 : vector<64x128xf32>
    %c0_12 = arith.constant 0 : index
    %c0_13 = arith.constant 0 : index
    %19 = vector.load %arg7[%c0_12, %c0_13] : memref<8x64xf32, #tpu.memory_space<vmem>>, vector<8x64xf32>
    %cst_14 = arith.constant dense<0.000000e+00> : vector<8x128xf32>
    %20 = tpu.matmul %19, %18, %cst_14 {dimension_numbers = #tpu.dot_dimension_numbers<[1], [0], [0], [1], [0, 0, 1, 1], [], []>, precision = #tpu.contract_precision<fp32>} : vector<8x64xf32>, vector<64x128xf32>, vector<8x128xf32> -> vector<8x128xf32>
    %c0_15 = arith.constant 0 : index
    %c0_16 = arith.constant 0 : index
    %21 = vector.load %arg8[%c0_15, %c0_16] : memref<8x1xf32, #tpu.memory_space<vmem>>, vector<8x1xf32>
    %22 = vector.broadcast %21 : vector<8x1xf32> to vector<8x128xf32>
    %23 = arith.addf %20, %22 : vector<8x128xf32>
    %c0_17 = arith.constant 0 : index
    %c0_18 = arith.constant 0 : index
    %24 = vector.load %arg1[%c0_17, %c0_18] : memref<6x128xf32, #tpu.memory_space<vmem>>, vector<6x128xf32>
    %25 = vector.extract_strided_slice %24 {offsets = [0, 0], sizes = [1, 128], strides = [1, 1]} : vector<6x128xf32> to vector<1x128xf32>
    %26 = vector.extract_strided_slice %24 {offsets = [1, 0], sizes = [1, 128], strides = [1, 1]} : vector<6x128xf32> to vector<1x128xf32>
    %27 = vector.extract_strided_slice %24 {offsets = [2, 0], sizes = [2, 128], strides = [1, 1]} : vector<6x128xf32> to vector<2x128xf32>
    %28 = vector.extract_strided_slice %24 {offsets = [4, 0], sizes = [2, 128], strides = [1, 1]} : vector<6x128xf32> to vector<2x128xf32>
    %cst_19 = arith.constant 5.000000e-01 : f32
    %29 = vector.broadcast %cst_19 : f32 to vector<2x128xf32>
    %30 = arith.mulf %29, %28 : vector<2x128xf32>
    %31 = arith.addf %27, %30 : vector<2x128xf32>
    %32 = vector.extract_strided_slice %23 {offsets = [0, 0], sizes = [2, 128], strides = [1, 1]} : vector<8x128xf32> to vector<2x128xf32>
    %33 = arith.addf %31, %32 : vector<2x128xf32>
    %34 = vector.extract_strided_slice %33 {offsets = [0, 0], sizes = [1, 128], strides = [1, 1]} : vector<2x128xf32> to vector<1x128xf32>
    %35 = vector.extract_strided_slice %33 {offsets = [1, 0], sizes = [1, 128], strides = [1, 1]} : vector<2x128xf32> to vector<1x128xf32>
    %36 = vector.extract_strided_slice %23 {offsets = [2, 0], sizes = [1, 128], strides = [1, 1]} : vector<8x128xf32> to vector<1x128xf32>
    %37 = vector.extract_strided_slice %23 {offsets = [3, 0], sizes = [1, 128], strides = [1, 1]} : vector<8x128xf32> to vector<1x128xf32>
    %38 = vector.extract_strided_slice %23 {offsets = [4, 0], sizes = [1, 128], strides = [1, 1]} : vector<8x128xf32> to vector<1x128xf32>
    %39 = vector.extract_strided_slice %23 {offsets = [5, 0], sizes = [1, 128], strides = [1, 1]} : vector<8x128xf32> to vector<1x128xf32>
    %40 = arith.addf %37, %38 : vector<1x128xf32>
    %41 = arith.addf %36, %39 : vector<1x128xf32>
    %42 = arith.subf %36, %39 : vector<1x128xf32>
    %43 = arith.mulf %42, %42 : vector<1x128xf32>
    %44 = arith.mulf %40, %40 : vector<1x128xf32>
    %45 = arith.addf %43, %44 : vector<1x128xf32>
    %46 = math.sqrt %45 : vector<1x128xf32>
    %47 = arith.addf %41, %46 : vector<1x128xf32>
    %48 = math.exp %47 : vector<1x128xf32>
    %49 = arith.subf %41, %46 : vector<1x128xf32>
    %50 = math.exp %49 : vector<1x128xf32>
    %51 = arith.addf %48, %50 : vector<1x128xf32>
    %cst_20 = arith.constant 5.000000e-01 : f32
    %52 = vector.broadcast %cst_20 : f32 to vector<1x128xf32>
    %53 = arith.mulf %52, %51 : vector<1x128xf32>
    %54 = arith.subf %48, %50 : vector<1x128xf32>
    %cst_21 = arith.constant 5.000000e-01 : f32
    %55 = vector.broadcast %cst_21 : f32 to vector<1x128xf32>
    %56 = arith.mulf %55, %54 : vector<1x128xf32>
    %cst_22 = arith.constant 1.000000e-03 : f32
    %57 = vector.broadcast %cst_22 : f32 to vector<1x128xf32>
    %58 = arith.cmpf olt, %46, %57 : vector<1x128xf32>
    %cst_23 = arith.constant 1.000000e+00 : f32
    %59 = vector.broadcast %cst_23 : f32 to vector<1x128xf32>
    %60 = arith.select %58, %59, %46 : vector<1x128xi1>, vector<1x128xf32>
    %61 = arith.divf %56, %60 : vector<1x128xf32>
    %62 = arith.select %58, %53, %61 : vector<1x128xi1>, vector<1x128xf32>
    %63 = arith.mulf %42, %62 : vector<1x128xf32>
    %64 = arith.addf %53, %63 : vector<1x128xf32>
    %65 = arith.mulf %40, %62 : vector<1x128xf32>
    %66 = arith.subf %53, %63 : vector<1x128xf32>
    %67 = arith.mulf %64, %25 : vector<1x128xf32>
    %68 = arith.mulf %65, %26 : vector<1x128xf32>
    %69 = arith.addf %67, %68 : vector<1x128xf32>
    %70 = arith.addf %69, %34 : vector<1x128xf32>
    %71 = arith.mulf %65, %25 : vector<1x128xf32>
    %72 = arith.mulf %66, %26 : vector<1x128xf32>
    %73 = arith.addf %71, %72 : vector<1x128xf32>
    %74 = arith.addf %73, %35 : vector<1x128xf32>
    %c0_24 = arith.constant 0 : index
    %c0_25 = arith.constant 0 : index
    %75 = vector.load %arg9[%c0_24, %c0_25] : memref<8x128xf32, #tpu.memory_space<vmem>>, vector<1x128xf32>
    tpu.vector_store %arg9[%c0_24, %c0_25], %70 {strides = array<i32>} : memref<8x128xf32, #tpu.memory_space<vmem>>, vector<1x128xf32>,
    %c1 = arith.constant 1 : index
    %c0_26 = arith.constant 0 : index
    %76 = vector.load %arg9[%c1, %c0_26] : memref<8x128xf32, #tpu.memory_space<vmem>>, vector<1x128xf32>
    tpu.vector_store %arg9[%c1, %c0_26], %74 {strides = array<i32>} : memref<8x128xf32, #tpu.memory_space<vmem>>, vector<1x128xf32>,
    %c2 = arith.constant 2 : index
    %c0_27 = arith.constant 0 : index
    %77 = vector.load %arg9[%c2, %c0_27] : memref<8x128xf32, #tpu.memory_space<vmem>>, vector<2x128xf32>
    tpu.vector_store %arg9[%c2, %c0_27], %33 {strides = array<i32>} : memref<8x128xf32, #tpu.memory_space<vmem>>, vector<2x128xf32>,
    %c4 = arith.constant 4 : index
    %c0_28 = arith.constant 0 : index
    %78 = vector.load %arg9[%c4, %c0_28] : memref<8x128xf32, #tpu.memory_space<vmem>>, vector<1x128xf32>
    tpu.vector_store %arg9[%c4, %c0_28], %64 {strides = array<i32>} : memref<8x128xf32, #tpu.memory_space<vmem>>, vector<1x128xf32>,
    %c5 = arith.constant 5 : index
    %c0_29 = arith.constant 0 : index
    %79 = vector.load %arg9[%c5, %c0_29] : memref<8x128xf32, #tpu.memory_space<vmem>>, vector<1x128xf32>
    tpu.vector_store %arg9[%c5, %c0_29], %65 {strides = array<i32>} : memref<8x128xf32, #tpu.memory_space<vmem>>, vector<1x128xf32>,
    %c6 = arith.constant 6 : index
    %c0_30 = arith.constant 0 : index
    %80 = vector.load %arg9[%c6, %c0_30] : memref<8x128xf32, #tpu.memory_space<vmem>>, vector<1x128xf32>
    tpu.vector_store %arg9[%c6, %c0_30], %65 {strides = array<i32>} : memref<8x128xf32, #tpu.memory_space<vmem>>, vector<1x128xf32>,
    %c7 = arith.constant 7 : index
    %c0_31 = arith.constant 0 : index
    %81 = vector.load %arg9[%c7, %c0_31] : memref<8x128xf32, #tpu.memory_space<vmem>>, vector<1x128xf32>
    tpu.vector_store %arg9[%c7, %c0_31], %66 {strides = array<i32>} : memref<8x128xf32, #tpu.memory_space<vmem>>, vector<1x128xf32>,
    return
  }
  func.func @transform_0(%arg0: i32) -> (i32, i32) {
    %c0_i32 = arith.constant 0 : i32
    %c0_i32_0 = arith.constant 0 : i32
    return %c0_i32, %arg0 : i32, i32
  }
  func.func @transform_1(%arg0: i32) -> (i32, i32) {
    %c0_i32 = arith.constant 0 : i32
    %c0_i32_0 = arith.constant 0 : i32
    return %c0_i32, %arg0 : i32, i32
  }
  func.func @transform_2(%arg0: i32) -> (i32, i32) {
    %c0_i32 = arith.constant 0 : i32
    %c0_i32_0 = arith.constant 0 : i32
    %c0_i32_1 = arith.constant 0 : i32
    return %c0_i32, %c0_i32_0 : i32, i32
  }
  func.func @transform_3(%arg0: i32) -> (i32, i32) {
    %c0_i32 = arith.constant 0 : i32
    %c0_i32_0 = arith.constant 0 : i32
    %c0_i32_1 = arith.constant 0 : i32
    return %c0_i32, %c0_i32_0 : i32, i32
  }
  func.func @transform_4(%arg0: i32) -> (i32, i32) {
    %c0_i32 = arith.constant 0 : i32
    %c0_i32_0 = arith.constant 0 : i32
    %c0_i32_1 = arith.constant 0 : i32
    return %c0_i32, %c0_i32_0 : i32, i32
  }
  func.func @transform_5(%arg0: i32) -> (i32, i32) {
    %c0_i32 = arith.constant 0 : i32
    %c0_i32_0 = arith.constant 0 : i32
    %c0_i32_1 = arith.constant 0 : i32
    return %c0_i32, %c0_i32_0 : i32, i32
  }
  func.func @transform_6(%arg0: i32) -> (i32, i32) {
    %c0_i32 = arith.constant 0 : i32
    %c0_i32_0 = arith.constant 0 : i32
    %c0_i32_1 = arith.constant 0 : i32
    return %c0_i32, %c0_i32_0 : i32, i32
  }
  func.func @transform_7(%arg0: i32) -> (i32, i32) {
    %c0_i32 = arith.constant 0 : i32
    %c0_i32_0 = arith.constant 0 : i32
    %c0_i32_1 = arith.constant 0 : i32
    return %c0_i32, %c0_i32_0 : i32, i32
  }
  func.func @transform_8(%arg0: i32) -> (i32, i32) {
    %c0_i32 = arith.constant 0 : i32
    %c0_i32_0 = arith.constant 0 : i32
    return %c0_i32, %arg0 : i32, i32
  }
}

</mosaic_0001>

<llo_original>
// kernel: tpu_custom_call.1
$region0: #{tpu_custom_call.1}
  #allocation0 [shape = 'u32[]', space=smem, size = 0x4, offset = 0x4, fixed_abs, tag = 'smem constant byte address 0x4 - core index']
  #allocation1 [shape = 'u32[144,128]{1,0:T(1,128)}', space=vmem, size = 0x12000, scoped, tag = 'internal scratch']
  %s0 = inlined_call_operand.vmem [shape: f32[6,128], index: 0, kind: input, shape index: {}]
  %s1 = inlined_call_operand.vmem [shape: f32[32,128], index: 1, kind: input, shape index: {}]
  %s2 = inlined_call_operand.vmem [shape: f32[64,32], index: 2, kind: input, shape index: {}]
  %s3 = inlined_call_operand.vmem [shape: f32[64,1], index: 3, kind: input, shape index: {}]
  %s4 = inlined_call_operand.vmem [shape: f32[64,64], index: 4, kind: input, shape index: {}]
  %s5 = inlined_call_operand.vmem [shape: f32[64,1], index: 5, kind: input, shape index: {}]
  %s6 = inlined_call_operand.vmem [shape: f32[8,64], index: 6, kind: input, shape index: {}]
  %s7 = inlined_call_operand.vmem [shape: f32[8,1], index: 7, kind: input, shape index: {}]
  %s8 = inlined_call_operand.hbm [shape: f32[8,128], index: 8, kind: output, shape index: {}]
  %s9 = sld [smem:[#allocation0]]
  $region42: #{tpu_custom_call.1} parent=0
    _
  %s11 = ssub.s32 1, %s9
  %s12 = scalar_select 0, %s11, %s9
  $region1: #{tpu_custom_call.1} parent=0
    #allocation2 [shape = 'u8[4096]{0}', space=vmem, size = 0x1000, scoped, tag = 'output window, operand 0, single buffered']
    #allocation3 [shape = 's32[1]{0}', space=sflag, size = 0x4, scoped, tag = 'scoped memory for tpu_custom_call.1']
    %13 = vsyncpa [#allocation3], 0
    // Predicated region
    $region2: #{tpu_custom_call.1} parent=1 // pred_check
      _
    $region3: #{tpu_custom_call.1} parent=1 // pred_check_branch
      %15 = sbr.rel (0) target = $region5
    $region4: #{tpu_custom_call.1} parent=1 // pred_region
      _
    $region5: #{tpu_custom_call.1} parent=1 // pred_fallthru
      _
    // Predicated region
    $region6: #{tpu_custom_call.1} parent=1 // pred_check
      _
    $region7: #{tpu_custom_call.1} parent=1 // pred_check_branch
      %17 = sbr.rel (0) target = $region9
    $region8: #{tpu_custom_call.1} parent=1 // pred_region
      _
    $region9: #{tpu_custom_call.1} parent=1 // pred_fallthru
      _
    // Predicated region
    $region10: #{tpu_custom_call.1} parent=1 // pred_check
      _
    $region11: #{tpu_custom_call.1} parent=1 // pred_check_branch
      %19 = sbr.rel (0) target = $region13
    $region12: #{tpu_custom_call.1} parent=1 // pred_region
      _
    $region13: #{tpu_custom_call.1} parent=1 // pred_fallthru
      _
    // Predicated region
    $region14: #{tpu_custom_call.1} parent=1 // pred_check
      _
    $region15: #{tpu_custom_call.1} parent=1 // pred_check_branch
      %21 = sbr.rel (0) target = $region17
    $region16: #{tpu_custom_call.1} parent=1 // pred_region
      _
    $region17: #{tpu_custom_call.1} parent=1 // pred_fallthru
      _
    // Predicated region
    $region18: #{tpu_custom_call.1} parent=1 // pred_check
      _
    $region19: #{tpu_custom_call.1} parent=1 // pred_check_branch
      %23 = sbr.rel (0) target = $region21
    $region20: #{tpu_custom_call.1} parent=1 // pred_region
      _
    $region21: #{tpu_custom_call.1} parent=1 // pred_fallthru
      _
    // Predicated region
    $region22: #{tpu_custom_call.1} parent=1 // pred_check
      _
    $region23: #{tpu_custom_call.1} parent=1 // pred_check_branch
      %25 = sbr.rel (0) target = $region25
    $region24: #{tpu_custom_call.1} parent=1 // pred_region
      _
    $region25: #{tpu_custom_call.1} parent=1 // pred_fallthru
      _
    // Predicated region
    $region26: #{tpu_custom_call.1} parent=1 // pred_check
      _
    $region27: #{tpu_custom_call.1} parent=1 // pred_check_branch
      %27 = sbr.rel (0) target = $region29
    $region28: #{tpu_custom_call.1} parent=1 // pred_region
      _
    $region29: #{tpu_custom_call.1} parent=1 // pred_fallthru
      _
    // Predicated region
    $region30: #{tpu_custom_call.1} parent=1 // pred_check
      _
    $region31: #{tpu_custom_call.1} parent=1 // pred_check_branch
      %29 = sbr.rel (0) target = $region33
    $region32: #{tpu_custom_call.1} parent=1 // pred_region
      _
    $region33: #{tpu_custom_call.1} parent=1 // pred_fallthru
      _
    %v30 = vld [vmem:[%s1] sm:$0xff]
    %v31 = vld [vmem:[%s1 + $0x8] sm:$0xff]
    %v32 = vld [vmem:[%s1 + $0x10] sm:$0xff]
    %v33 = vld [vmem:[%s1 + $0x18] sm:$0xff]
    %v34 = vld [vmem:[%s2] sm:$0xff]
    %v35 = vld [vmem:[%s2 + $0x8] sm:$0xff]
    %v36 = vld [vmem:[%s2 + $0x10] sm:$0xff]
    %v37 = vld [vmem:[%s2 + $0x18] sm:$0xff]
    %v38 = vld [vmem:[%s2 + $0x20] sm:$0xff]
    %v39 = vld [vmem:[%s2 + $0x28] sm:$0xff]
    %v40 = vld [vmem:[%s2 + $0x30] sm:$0xff]
    %v41 = vld [vmem:[%s2 + $0x38] sm:$0xff]
    %v42 = vld [vmem:[%s3] sm:$0xff]
    %v43 = vld [vmem:[%s3 + $0x8] sm:$0xff]
    %v44 = vld [vmem:[%s3 + $0x10] sm:$0xff]
    %v45 = vld [vmem:[%s3 + $0x18] sm:$0xff]
    %v46 = vld [vmem:[%s3 + $0x20] sm:$0xff]
    %v47 = vld [vmem:[%s3 + $0x28] sm:$0xff]
    %v48 = vld [vmem:[%s3 + $0x30] sm:$0xff]
    %v49 = vld [vmem:[%s3 + $0x38] sm:$0xff]
    %51 = vset.pattern.permute.xlu0 0
    %52 = vperm.xlu0 %51, %v42
    %v53 = vpop.permute.xlu0 %52
    %56 = vset.pattern.permute.xlu0 0
    %57 = vperm.xlu0 %56, %v43
    %v58 = vpop.permute.xlu0 %57
    %61 = vset.pattern.permute.xlu0 0
    %62 = vperm.xlu0 %61, %v44
    %v63 = vpop.permute.xlu0 %62
    %66 = vset.pattern.permute.xlu0 0
    %67 = vperm.xlu0 %66, %v45
    %v68 = vpop.permute.xlu0 %67
    %71 = vset.pattern.permute.xlu0 0
    %72 = vperm.xlu0 %71, %v46
    %v73 = vpop.permute.xlu0 %72
    %76 = vset.pattern.permute.xlu0 0
    %77 = vperm.xlu0 %76, %v47
    %v78 = vpop.permute.xlu0 %77
    %81 = vset.pattern.permute.xlu0 0
    %82 = vperm.xlu0 %81, %v48
    %v83 = vpop.permute.xlu0 %82
    %86 = vset.pattern.permute.xlu0 0
    %87 = vperm.xlu0 %86, %v49
    %v88 = vpop.permute.xlu0 %87
    %vm90 = vcmask 261120
    %v92 = vsel %vm90, %v34, 0
    %v95 = vsel %vm90, %v35, 0
    %v98 = vsel %vm90, %v36, 0
    %v101 = vsel %vm90, %v37, 0
    %v104 = vsel %vm90, %v38, 0
    %v107 = vsel %vm90, %v39, 0
    %v110 = vsel %vm90, %v40, 0
    %v113 = vsel %vm90, %v41, 0
    %115 = vmatprep.subr.mxu0 0.0
    %v116 = vand.u32 %v30, 4294901760
    %117 = vmatpush1.msra.mxu0 %v116
    %118 = vmatprep.subr.mxu0 0.0
    %v119 = vand.u32 %v31, 4294901760
    %120 = vmatpush1.msra.mxu0 %v119
    %121 = vmatprep.subr.mxu0 0.0
    %v122 = vand.u32 %v32, 4294901760
    %123 = vmatpush1.msra.mxu0 %v122
    %124 = vmatprep.subr.mxu0 0.0
    %v125 = vand.u32 %v33, 4294901760
    %126 = vmatpush1.msra.mxu0 %v125
    %127 = vmatprep.subr.mxu0 0.0
    %128 = vmatpush1.msra.mxu0 0.0
    %129 = vmatprep.subr.mxu0 0.0
    %130 = vmatpush1.msra.mxu0 0.0
    %131 = vmatprep.subr.mxu0 0.0
    %132 = vmatpush1.msra.mxu0 0.0
    %133 = vmatprep.subr.mxu0 0.0
    %134 = vmatpush1.msra.mxu0 0.0
    %135 = vmatprep.subr.mxu0 0.0
    %136 = vmatpush1.msra.mxu0 0.0
    %137 = vmatprep.subr.mxu0 0.0
    %138 = vmatpush1.msra.mxu0 0.0
    %139 = vmatprep.subr.mxu0 0.0
    %140 = vmatpush1.msra.mxu0 0.0
    %141 = vmatprep.subr.mxu0 0.0
    %142 = vmatpush1.msra.mxu0 0.0
    %143 = vmatprep.subr.mxu0 0.0
    %144 = vmatpush1.msra.mxu0 0.0
    %145 = vmatprep.subr.mxu0 0.0
    %146 = vmatpush1.msra.mxu0 0.0
    %147 = vmatprep.subr.mxu0 0.0
    %148 = vmatpush1.msra.mxu0 0.0
    %149 = vmatprep.subr.mxu0 0.0
    %150 = vmatpush1.msra.mxu0 0.0
    %151 = vmatprep.subr.mxu0 0.0
    %152 = vmatpush1.msra.mxu0 0.0
    %153 = vmatprep.subr.mxu0 0.0
    %154 = vmatpush1.msra.mxu0 0.0
    %155 = vmatprep.subr.mxu0 0.0
    %156 = vmatpush1.msra.mxu0 0.0
    %157 = vmatprep.subr.mxu0 0.0
    %158 = vmatpush1.msra.mxu0 0.0
    %159 = vmatprep.subr.mxu0 0.0
    %160 = vmatpush1.msra.mxu0 0.0
    %161 = vmatprep.subr.mxu0 0.0
    %162 = vmatpush1.msra.mxu0 0.0
    %163 = vmatprep.subr.mxu0 0.0
    %164 = vmatpush1.msra.mxu0 0.0
    %165 = vmatprep.subr.mxu0 0.0
    %166 = vmatpush1.msra.mxu0 0.0
    %167 = vmatprep.subr.mxu0 0.0
    %168 = vmatpush1.msra.mxu0 0.0
    %169 = vmatprep.subr.mxu0 0.0
    %170 = vmatpush1.msra.mxu0 0.0
    %171 = vmatprep.subr.mxu0 0.0
    %172 = vmatpush1.msra.mxu0 0.0
    %173 = vmatprep.subr.mxu0 0.0
    %174 = vmatpush1.msra.mxu0 0.0
    %175 = vmatprep.subr.mxu0 0.0
    %176 = vmatpush1.msra.mxu0 0.0
    %177 = vmatprep.subr.mxu0 0.0
    %178 = vmatpush1.msra.mxu0 0.0
    %179 = vmatprep.subr.mxu0 0.0
    %180 = vmatpush1.msra.mxu0 0.0
    %181 = vmatprep.subr.mxu0 0.0
    %182 = vmatpush1.msra.mxu0 0.0
    %183 = vmatprep.mubr.f32.mxu0 0.0
    %v184 = vand.u32 %v92, 4294901760
    %v185 = vsub.f32 %v92, %v184
    %v186 = vand.u32 %v185, 4294901760
    %v187 = vsub.f32 %v185, %v186
    %v188 = vand.u32 %v187, 4294901760
    %189 = vmatmul.mubr.f32.gmra.mrb[0].mxu0 %v188
    %v190 = vpop.f32.mrb[0].mxu0
    %v191 = vadd.f32 %v53, %v190
    %v192 = vpop.f32.mrb[0].mxu0
    %193 = vmatprep.mubr.f32.mxu0 0.0
    %v194 = vand.u32 %v95, 4294901760
    %v195 = vsub.f32 %v95, %v194
    %v196 = vand.u32 %v195, 4294901760
    %v197 = vsub.f32 %v195, %v196
    %v198 = vand.u32 %v197, 4294901760
    %199 = vmatmul.mubr.f32.gmra.mrb[0].mxu0 %v198
    %v200 = vpop.f32.mrb[0].mxu0
    %v201 = vadd.f32 %v58, %v200
    %v202 = vpop.f32.mrb[0].mxu0
    %203 = vmatprep.mubr.f32.mxu0 0.0
    %v204 = vand.u32 %v98, 4294901760
    %v205 = vsub.f32 %v98, %v204
    %v206 = vand.u32 %v205, 4294901760
    %v207 = vsub.f32 %v205, %v206
    %v208 = vand.u32 %v207, 4294901760
    %209 = vmatmul.mubr.f32.gmra.mrb[0].mxu0 %v208
    %v210 = vpop.f32.mrb[0].mxu0
    %v211 = vadd.f32 %v63, %v210
    %v212 = vpop.f32.mrb[0].mxu0
    %213 = vmatprep.mubr.f32.mxu0 0.0
    %v214 = vand.u32 %v101, 4294901760
    %v215 = vsub.f32 %v101, %v214
    %v216 = vand.u32 %v215, 4294901760
    %v217 = vsub.f32 %v215, %v216
    %v218 = vand.u32 %v217, 4294901760
    %219 = vmatmul.mubr.f32.gmra.mrb[0].mxu0 %v218
    %v220 = vpop.f32.mrb[0].mxu0
    %v221 = vadd.f32 %v68, %v220
    %v222 = vpop.f32.mrb[0].mxu0
    %223 = vmatprep.mubr.f32.mxu0 0.0
    %v224 = vand.u32 %v104, 4294901760
    %v225 = vsub.f32 %v104, %v224
    %v226 = vand.u32 %v225, 4294901760
    %v227 = vsub.f32 %v225, %v226
    %v228 = vand.u32 %v227, 4294901760
    %229 = vmatmul.mubr.f32.gmra.mrb[0].mxu0 %v228
    %v230 = vpop.f32.mrb[0].mxu0
    %v231 = vadd.f32 %v73, %v230
    %v232 = vpop.f32.mrb[0].mxu0
    %233 = vmatprep.mubr.f32.mxu0 0.0
    %v234 = vand.u32 %v107, 4294901760
    %v235 = vsub.f32 %v107, %v234
    %v236 = vand.u32 %v235, 4294901760
    %v237 = vsub.f32 %v235, %v236
    %v238 = vand.u32 %v237, 4294901760
    %239 = vmatmul.mubr.f32.gmra.mrb[0].mxu0 %v238
    %v240 = vpop.f32.mrb[0].mxu0
    %v241 = vadd.f32 %v78, %v240
    %v242 = vpop.f32.mrb[0].mxu0
    %243 = vmatprep.mubr.f32.mxu0 0.0
    %v244 = vand.u32 %v110, 4294901760
    %v245 = vsub.f32 %v110, %v244
    %v246 = vand.u32 %v245, 4294901760
    %v247 = vsub.f32 %v245, %v246
    %v248 = vand.u32 %v247, 4294901760
    %249 = vmatmul.mubr.f32.gmra.mrb[0].mxu0 %v248
    %v250 = vpop.f32.mrb[0].mxu0
    %v251 = vadd.f32 %v83, %v250
    %v252 = vpop.f32.mrb[0].mxu0
    %253 = vmatprep.mubr.f32.mxu0 0.0
    %v254 = vand.u32 %v113, 4294901760
    %v255 = vsub.f32 %v113, %v254
    %v256 = vand.u32 %v255, 4294901760
    %v257 = vsub.f32 %v255, %v256
    %v258 = vand.u32 %v257, 4294901760
    %259 = vmatmul.mubr.f32.gmra.mrb[0].mxu0 %v258
    %v260 = vpop.f32.mrb[0].mxu0
    %v261 = vadd.f32 %v88, %v260
    %v262 = vpop.f32.mrb[0].mxu0
    %263 = vdwg.mxu0
    %264 = vmatprep.subr.mxu0 0.0
    %v265 = vand.u32 %v30, 4294901760
    %v266 = vsub.f32 %v30, %v265
    %v267 = vand.u32 %v266, 4294901760
    %v268 = vsub.f32 %v266, %v267
    %v269 = vand.u32 %v268, 4294901760
    %270 = vmatpush1.msra.mxu0 %v269
    %271 = vmatprep.subr.mxu0 0.0
    %v272 = vand.u32 %v31, 4294901760
    %v273 = vsub.f32 %v31, %v272
    %v274 = vand.u32 %v273, 4294901760
    %v275 = vsub.f32 %v273, %v274
    %v276 = vand.u32 %v275, 4294901760
    %277 = vmatpush1.msra.mxu0 %v276
    %278 = vmatprep.subr.mxu0 0.0
    %v279 = vand.u32 %v32, 4294901760
    %v280 = vsub.f32 %v32, %v279
    %v281 = vand.u32 %v280, 4294901760
    %v282 = vsub.f32 %v280, %v281
    %v283 = vand.u32 %v282, 4294901760
    %284 = vmatpush1.msra.mxu0 %v283
    %285 = vmatprep.subr.mxu0 0.0
    %v286 = vand.u32 %v33, 4294901760
    %v287 = vsub.f32 %v33, %v286
    %v288 = vand.u32 %v287, 4294901760
    %v289 = vsub.f32 %v287, %v288
    %v290 = vand.u32 %v289, 4294901760
    %291 = vmatpush1.msra.mxu0 %v290
    %292 = vmatprep.subr.mxu0 0.0
    %293 = vmatpush1.msra.mxu0 0.0
    %294 = vmatprep.subr.mxu0 0.0
    %295 = vmatpush1.msra.mxu0 0.0
    %296 = vmatprep.subr.mxu0 0.0
    %297 = vmatpush1.msra.mxu0 0.0
    %298 = vmatprep.subr.mxu0 0.0
    %299 = vmatpush1.msra.mxu0 0.0
    %300 = vmatprep.subr.mxu0 0.0
    %301 = vmatpush1.msra.mxu0 0.0
    %302 = vmatprep.subr.mxu0 0.0
    %303 = vmatpush1.msra.mxu0 0.0
    %304 = vmatprep.subr.mxu0 0.0
    %305 = vmatpush1.msra.mxu0 0.0
    %306 = vmatprep.subr.mxu0 0.0
    %307 = vmatpush1.msra.mxu0 0.0
    %308 = vmatprep.subr.mxu0 0.0
    %309 = vmatpush1.msra.mxu0 0.0
    %310 = vmatprep.subr.mxu0 0.0
    %311 = vmatpush1.msra.mxu0 0.0
    %312 = vmatprep.subr.mxu0 0.0
    %313 = vmatpush1.msra.mxu0 0.0
    %314 = vmatprep.subr.mxu0 0.0
    %315 = vmatpush1.msra.mxu0 0.0
    %316 = vmatprep.subr.mxu0 0.0
    %317 = vmatpush1.msra.mxu0 0.0
    %318 = vmatprep.subr.mxu0 0.0
    %319 = vmatpush1.msra.mxu0 0.0
    %320 = vmatprep.subr.mxu0 0.0
    %321 = vmatpush1.msra.mxu0 0.0
    %322 = vmatprep.subr.mxu0 0.0
    %323 = vmatpush1.msra.mxu0 0.0
    %324 = vmatprep.subr.mxu0 0.0
    %325 = vmatpush1.msra.mxu0 0.0
    %326 = vmatprep.subr.mxu0 0.0
    %327 = vmatpush1.msra.mxu0 0.0
    %328 = vmatprep.subr.mxu0 0.0
    %329 = vmatpush1.msra.mxu0 0.0
    %330 = vmatprep.subr.mxu0 0.0
    %331 = vmatpush1.msra.mxu0 0.0
    %332 = vmatprep.subr.mxu0 0.0
    %333 = vmatpush1.msra.mxu0 0.0
    %334 = vmatprep.subr.mxu0 0.0
    %335 = vmatpush1.msra.mxu0 0.0
    %336 = vmatprep.subr.mxu0 0.0
    %337 = vmatpush1.msra.mxu0 0.0
    %338 = vmatprep.subr.mxu0 0.0
    %339 = vmatpush1.msra.mxu0 0.0
    %340 = vmatprep.subr.mxu0 0.0
    %341 = vmatpush1.msra.mxu0 0.0
    %342 = vmatprep.subr.mxu0 0.0
    %343 = vmatpush1.msra.mxu0 0.0
    %344 = vmatprep.subr.mxu0 0.0
    %345 = vmatpush1.msra.mxu0 0.0
    %346 = vmatprep.subr.mxu0 0.0
    %347 = vmatpush1.msra.mxu0 0.0
    %348 = vmatprep.mubr.f32.mxu0 0.0
    %v349 = vand.u32 %v92, 4294901760
    %350 = vmatmul.mubr.f32.gmra.mrb[0].mxu0 %v349
    %v351 = vpop.f32.mrb[0].mxu0
    %v352 = vadd.f32 %v191, %v351
    %v353 = vpop.f32.mrb[0].mxu0
    %354 = vmatprep.mubr.f32.mxu0 0.0
    %v355 = vand.u32 %v95, 4294901760
    %356 = vmatmul.mubr.f32.gmra.mrb[0].mxu0 %v355
    %v357 = vpop.f32.mrb[0].mxu0
    %v358 = vadd.f32 %v201, %v357
    %v359 = vpop.f32.mrb[0].mxu0
    %360 = vmatprep.mubr.f32.mxu0 0.0
    %v361 = vand.u32 %v98, 4294901760
    %362 = vmatmul.mubr.f32.gmra.mrb[0].mxu0 %v361
    %v363 = vpop.f32.mrb[0].mxu0
    %v364 = vadd.f32 %v211, %v363
    %v365 = vpop.f32.mrb[0].mxu0
    %366 = vmatprep.mubr.f32.mxu0 0.0
    %v367 = vand.u32 %v101, 4294901760
    %368 = vmatmul.mubr.f32.gmra.mrb[0].mxu0 %v367
    %v369 = vpop.f32.mrb[0].mxu0
    %v370 = vadd.f32 %v221, %v369
    %v371 = vpop.f32.mrb[0].mxu0
    %372 = vmatprep.mubr.f32.mxu0 0.0
    %v373 = vand.u32 %v104, 4294901760
    %374 = vmatmul.mubr.f32.gmra.mrb[0].mxu0 %v373
    %v375 = vpop.f32.mrb[0].mxu0
    %v376 = vadd.f32 %v231, %v375
    %v377 = vpop.f32.mrb[0].mxu0
    %378 = vmatprep.mubr.f32.mxu0 0.0
    %v379 = vand.u32 %v107, 4294901760
    %380 = vmatmul.mubr.f32.gmra.mrb[0].mxu0 %v379
    %v381 = vpop.f32.mrb[0].mxu0
    %v382 = vadd.f32 %v241, %v381
    %v383 = vpop.f32.mrb[0].mxu0
    %384 = vmatprep.mubr.f32.mxu0 0.0
    %v385 = vand.u32 %v110, 4294901760
    %386 = vmatmul.mubr.f32.gmra.mrb[0].mxu0 %v385
    %v387 = vpop.f32.mrb[0].mxu0
    %v388 = vadd.f32 %v251, %v387
    %v389 = vpop.f32.mrb[0].mxu0
    %390 = vmatprep.mubr.f32.mxu0 0.0
    %v391 = vand.u32 %v113, 4294901760
    %392 = vmatmul.mubr.f32.gmra.mrb[0].mxu0 %v391
    %v393 = vpop.f32.mrb[0].mxu0
    %v394 = vadd.f32 %v261, %v393
    %v395 = vpop.f32.mrb[0].mxu0
    %396 = vdwg.mxu0
    %397 = vmatprep.subr.mxu0 0.0
    %v398 = vand.u32 %v30, 4294901760
    %v399 = vsub.f32 %v30, %v398
    %400 = vmatpush1.msra.mxu0 %v399
    %401 = vmatprep.subr.mxu0 0.0
    %v402 = vand.u32 %v31, 4294901760
    %v403 = vsub.f32 %v31, %v402
    %404 = vmatpush1.msra.mxu0 %v403
    %405 = vmatprep.subr.mxu0 0.0
    %v406 = vand.u32 %v32, 4294901760
    %v407 = vsub.f32 %v32, %v406
    %408 = vmatpush1.msra.mxu0 %v407
    %409 = vmatprep.subr.mxu0 0.0
    %v410 = vand.u32 %v33, 4294901760
    %v411 = vsub.f32 %v33, %v410
    %412 = vmatpush1.msra.mxu0 %v411
    %413 = vmatprep.subr.mxu0 0.0
    %414 = vmatpush1.msra.mxu0 0.0
    %415 = vmatprep.subr.mxu0 0.0
    %416 = vmatpush1.msra.mxu0 0.0
    %417 = vmatprep.subr.mxu0 0.0
    %418 = vmatpush1.msra.mxu0 0.0
    %419 = vmatprep.subr.mxu0 0.0
    %420 = vmatpush1.msra.mxu0 0.0
    %421 = vmatprep.subr.mxu0 0.0
    %422 = vmatpush1.msra.mxu0 0.0
    %423 = vmatprep.subr.mxu0 0.0
    %424 = vmatpush1.msra.mxu0 0.0
    %425 = vmatprep.subr.mxu0 0.0
    %426 = vmatpush1.msra.mxu0 0.0
    %427 = vmatprep.subr.mxu0 0.0
    %428 = vmatpush1.msra.mxu0 0.0
    %429 = vmatprep.subr.mxu0 0.0
    %430 = vmatpush1.msra.mxu0 0.0
    %431 = vmatprep.subr.mxu0 0.0
    %432 = vmatpush1.msra.mxu0 0.0
    %433 = vmatprep.subr.mxu0 0.0
    %434 = vmatpush1.msra.mxu0 0.0
    %435 = vmatprep.subr.mxu0 0.0
    %436 = vmatpush1.msra.mxu0 0.0
    %437 = vmatprep.subr.mxu0 0.0
    %438 = vmatpush1.msra.mxu0 0.0
    %439 = vmatprep.subr.mxu0 0.0
    %440 = vmatpush1.msra.mxu0 0.0
    %441 = vmatprep.subr.mxu0 0.0
    %442 = vmatpush1.msra.mxu0 0.0
    %443 = vmatprep.subr.mxu0 0.0
    %444 = vmatpush1.msra.mxu0 0.0
    %445 = vmatprep.subr.mxu0 0.0
    %446 = vmatpush1.msra.mxu0 0.0
    %447 = vmatprep.subr.mxu0 0.0
    %448 = vmatpush1.msra.mxu0 0.0
    %449 = vmatprep.subr.mxu0 0.0
    %450 = vmatpush1.msra.mxu0 0.0
    %451 = vmatprep.subr.mxu0 0.0
    %452 = vmatpush1.msra.mxu0 0.0
    %453 = vmatprep.subr.mxu0 0.0
    %454 = vmatpush1.msra.mxu0 0.0
    %455 = vmatprep.subr.mxu0 0.0
    %456 = vmatpush1.msra.mxu0 0.0
    %457 = vmatprep.subr.mxu0 0.0
    %458 = vmatpush1.msra.mxu0 0.0
    %459 = vmatprep.subr.mxu0 0.0
    %460 = vmatpush1.msra.mxu0 0.0
    %461 = vmatprep.subr.mxu0 0.0
    %462 = vmatpush1.msra.mxu0 0.0
    %463 = vmatprep.subr.mxu0 0.0
    %464 = vmatpush1.msra.mxu0 0.0
    %465 = vmatprep.subr.mxu0 0.0
    %466 = vmatpush1.msra.mxu0 0.0
    %467 = vmatprep.subr.mxu0 0.0
    %468 = vmatpush1.msra.mxu0 0.0
    %469 = vmatprep.mubr.f32.mxu0 0.0
    %v470 = vand.u32 %v92, 4294901760
    %v471 = vsub.f32 %v92, %v470
    %472 = vmatmul.mubr.f32.gmra.mrb[0].mxu0 %v471
    %v473 = vpop.f32.mrb[0].mxu0
    %v474 = vadd.f32 %v352, %v473
    %v475 = vpop.f32.mrb[0].mxu0
    %476 = vmatprep.mubr.f32.mxu0 0.0
    %v477 = vand.u32 %v95, 4294901760
    %v478 = vsub.f32 %v95, %v477
    %479 = vmatmul.mubr.f32.gmra.mrb[0].mxu0 %v478
    %v480 = vpop.f32.mrb[0].mxu0
    %v481 = vadd.f32 %v358, %v480
    %v482 = vpop.f32.mrb[0].mxu0
    %483 = vmatprep.mubr.f32.mxu0 0.0
    %v484 = vand.u32 %v98, 4294901760
    %v485 = vsub.f32 %v98, %v484
    %486 = vmatmul.mubr.f32.gmra.mrb[0].mxu0 %v485
    %v487 = vpop.f32.mrb[0].mxu0
    %v488 = vadd.f32 %v364, %v487
    %v489 = vpop.f32.mrb[0].mxu0
    %490 = vmatprep.mubr.f32.mxu0 0.0
    %v491 = vand.u32 %v101, 4294901760
    %v492 = vsub.f32 %v101, %v491
    %493 = vmatmul.mubr.f32.gmra.mrb[0].mxu0 %v492
    %v494 = vpop.f32.mrb[0].mxu0
    %v495 = vadd.f32 %v370, %v494
    %v496 = vpop.f32.mrb[0].mxu0
    %497 = vmatprep.mubr.f32.mxu0 0.0
    %v498 = vand.u32 %v104, 4294901760
    %v499 = vsub.f32 %v104, %v498
    %500 = vmatmul.mubr.f32.gmra.mrb[0].mxu0 %v499
    %v501 = vpop.f32.mrb[0].mxu0
    %v502 = vadd.f32 %v376, %v501
    %v503 = vpop.f32.mrb[0].mxu0
    %504 = vmatprep.mubr.f32.mxu0 0.0
    %v505 = vand.u32 %v107, 4294901760
    %v506 = vsub.f32 %v107, %v505
    %507 = vmatmul.mubr.f32.gmra.mrb[0].mxu0 %v506
    %v508 = vpop.f32.mrb[0].mxu0
    %v509 = vadd.f32 %v382, %v508
    %v510 = vpop.f32.mrb[0].mxu0
    %511 = vmatprep.mubr.f32.mxu0 0.0
    %v512 = vand.u32 %v110, 4294901760
    %v513 = vsub.f32 %v110, %v512
    %514 = vmatmul.mubr.f32.gmra.mrb[0].mxu0 %v513
    %v515 = vpop.f32.mrb[0].mxu0
    %v516 = vadd.f32 %v388, %v515
    %v517 = vpop.f32.mrb[0].mxu0
    %518 = vmatprep.mubr.f32.mxu0 0.0
    %v519 = vand.u32 %v113, 4294901760
    %v520 = vsub.f32 %v113, %v519
    %521 = vmatmul.mubr.f32.gmra.mrb[0].mxu0 %v520
    %v522 = vpop.f32.mrb[0].mxu0
    %v523 = vadd.f32 %v394, %v522
    %v524 = vpop.f32.mrb[0].mxu0
    %525 = vdwg.mxu0
    %526 = vmatprep.subr.mxu0 0.0
    %v527 = vand.u32 %v30, 4294901760
    %528 = vmatpush1.msra.mxu0 %v527
    %529 = vmatprep.subr.mxu0 0.0
    %v530 = vand.u32 %v31, 4294901760
    %531 = vmatpush1.msra.mxu0 %v530
    %532 = vmatprep.subr.mxu0 0.0
    %v533 = vand.u32 %v32, 4294901760
    %534 = vmatpush1.msra.mxu0 %v533
    %535 = vmatprep.subr.mxu0 0.0
    %v536 = vand.u32 %v33, 4294901760
    %537 = vmatpush1.msra.mxu0 %v536
    %538 = vmatprep.subr.mxu0 0.0
    %539 = vmatpush1.msra.mxu0 0.0
    %540 = vmatprep.subr.mxu0 0.0
    %541 = vmatpush1.msra.mxu0 0.0
    %542 = vmatprep.subr.mxu0 0.0
    %543 = vmatpush1.msra.mxu0 0.0
    %544 = vmatprep.subr.mxu0 0.0
    %545 = vmatpush1.msra.mxu0 0.0
    %546 = vmatprep.subr.mxu0 0.0
    %547 = vmatpush1.msra.mxu0 0.0
    %548 = vmatprep.subr.mxu0 0.0
    %549 = vmatpush1.msra.mxu0 0.0
    %550 = vmatprep.subr.mxu0 0.0
    %551 = vmatpush1.msra.mxu0 0.0
    %552 = vmatprep.subr.mxu0 0.0
    %553 = vmatpush1.msra.mxu0 0.0
    %554 = vmatprep.subr.mxu0 0.0
    %555 = vmatpush1.msra.mxu0 0.0
    %556 = vmatprep.subr.mxu0 0.0
    %557 = vmatpush1.msra.mxu0 0.0
    %558 = vmatprep.subr.mxu0 0.0
    %559 = vmatpush1.msra.mxu0 0.0
    %560 = vmatprep.subr.mxu0 0.0
    %561 = vmatpush1.msra.mxu0 0.0
    %562 = vmatprep.subr.mxu0 0.0
    %563 = vmatpush1.msra.mxu0 0.0
    %564 = vmatprep.subr.mxu0 0.0
    %565 = vmatpush1.msra.mxu0 0.0
    %566 = vmatprep.subr.mxu0 0.0
    %567 = vmatpush1.msra.mxu0 0.0
    %568 = vmatprep.subr.mxu0 0.0
    %569 = vmatpush1.msra.mxu0 0.0
    %570 = vmatprep.subr.mxu0 0.0
    %571 = vmatpush1.msra.mxu0 0.0
    %572 = vmatprep.subr.mxu0 0.0
    %573 = vmatpush1.msra.mxu0 0.0
    %574 = vmatprep.subr.mxu0 0.0
    %575 = vmatpush1.msra.mxu0 0.0
    %576 = vmatprep.subr.mxu0 0.0
    %577 = vmatpush1.msra.mxu0 0.0
    %578 = vmatprep.subr.mxu0 0.0
    %579 = vmatpush1.msra.mxu0 0.0
    %580 = vmatprep.subr.mxu0 0.0
    %581 = vmatpush1.msra.mxu0 0.0
    %582 = vmatprep.subr.mxu0 0.0
    %583 = vmatpush1.msra.mxu0 0.0
    %584 = vmatprep.subr.mxu0 0.0
    %585 = vmatpush1.msra.mxu0 0.0
    %586 = vmatprep.subr.mxu0 0.0
    %587 = vmatpush1.msra.mxu0 0.0
    %588 = vmatprep.subr.mxu0 0.0
    %589 = vmatpush1.msra.mxu0 0.0
    %590 = vmatprep.subr.mxu0 0.0
    %591 = vmatpush1.msra.mxu0 0.0
    %592 = vmatprep.subr.mxu0 0.0
    %593 = vmatpush1.msra.mxu0 0.0
    %594 = vmatprep.mubr.f32.mxu0 0.0
    %v595 = vand.u32 %v92, 4294901760
    %v596 = vsub.f32 %v92, %v595
    %v597 = vand.u32 %v596, 4294901760
    %598 = vmatmul.mubr.f32.gmra.mrb[0].mxu0 %v597
    %v599 = vpop.f32.mrb[0].mxu0
    %v600 = vadd.f32 %v474, %v599
    %v601 = vpop.f32.mrb[0].mxu0
    %602 = vmatprep.mubr.f32.mxu0 0.0
    %v603 = vand.u32 %v95, 4294901760
    %v604 = vsub.f32 %v95, %v603
    %v605 = vand.u32 %v604, 4294901760
    %606 = vmatmul.mubr.f32.gmra.mrb[0].mxu0 %v605
    %v607 = vpop.f32.mrb[0].mxu0
    %v608 = vadd.f32 %v481, %v607
    %v609 = vpop.f32.mrb[0].mxu0
    %610 = vmatprep.mubr.f32.mxu0 0.0
    %v611 = vand.u32 %v98, 4294901760
    %v612 = vsub.f32 %v98, %v611
    %v613 = vand.u32 %v612, 4294901760
    %614 = vmatmul.mubr.f32.gmra.mrb[0].mxu0 %v613
    %v615 = vpop.f32.mrb[0].mxu0
    %v616 = vadd.f32 %v488, %v615
    %v617 = vpop.f32.mrb[0].mxu0
    %618 = vmatprep.mubr.f32.mxu0 0.0
    %v619 = vand.u32 %v101, 4294901760
    %v620 = vsub.f32 %v101, %v619
    %v621 = vand.u32 %v620, 4294901760
    %622 = vmatmul.mubr.f32.gmra.mrb[0].mxu0 %v621
    %v623 = vpop.f32.mrb[0].mxu0
    %v624 = vadd.f32 %v495, %v623
    %v625 = vpop.f32.mrb[0].mxu0
    %626 = vmatprep.mubr.f32.mxu0 0.0
    %v627 = vand.u32 %v104, 4294901760
    %v628 = vsub.f32 %v104, %v627
    %v629 = vand.u32 %v628, 4294901760
    %630 = vmatmul.mubr.f32.gmra.mrb[0].mxu0 %v629
    %v631 = vpop.f32.mrb[0].mxu0
    %v632 = vadd.f32 %v502, %v631
    %v633 = vpop.f32.mrb[0].mxu0
    %634 = vmatprep.mubr.f32.mxu0 0.0
    %v635 = vand.u32 %v107, 4294901760
    %v636 = vsub.f32 %v107, %v635
    %v637 = vand.u32 %v636, 4294901760
    %638 = vmatmul.mubr.f32.gmra.mrb[0].mxu0 %v637
    %v639 = vpop.f32.mrb[0].mxu0
    %v640 = vadd.f32 %v509, %v639
    %v641 = vpop.f32.mrb[0].mxu0
    %642 = vmatprep.mubr.f32.mxu0 0.0
    %v643 = vand.u32 %v110, 4294901760
    %v644 = vsub.f32 %v110, %v643
    %v645 = vand.u32 %v644, 4294901760
    %646 = vmatmul.mubr.f32.gmra.mrb[0].mxu0 %v645
    %v647 = vpop.f32.mrb[0].mxu0
    %v648 = vadd.f32 %v516, %v647
    %v649 = vpop.f32.mrb[0].mxu0
    %650 = vmatprep.mubr.f32.mxu0 0.0
    %v651 = vand.u32 %v113, 4294901760
    %v652 = vsub.f32 %v113, %v651
    %v653 = vand.u32 %v652, 4294901760
    %654 = vmatmul.mubr.f32.gmra.mrb[0].mxu0 %v653
    %v655 = vpop.f32.mrb[0].mxu0
    %v656 = vadd.f32 %v523, %v655
    %v657 = vpop.f32.mrb[0].mxu0
    %658 = vdwg.mxu0
    %659 = vmatprep.subr.mxu0 0.0
    %v660 = vand.u32 %v30, 4294901760
    %v661 = vsub.f32 %v30, %v660
    %v662 = vand.u32 %v661, 4294901760
    %663 = vmatpush1.msra.mxu0 %v662
    %664 = vmatprep.subr.mxu0 0.0
    %v665 = vand.u32 %v31, 4294901760
    %v666 = vsub.f32 %v31, %v665
    %v667 = vand.u32 %v666, 4294901760
    %668 = vmatpush1.msra.mxu0 %v667
    %669 = vmatprep.subr.mxu0 0.0
    %v670 = vand.u32 %v32, 4294901760
    %v671 = vsub.f32 %v32, %v670
    %v672 = vand.u32 %v671, 4294901760
    %673 = vmatpush1.msra.mxu0 %v672
    %674 = vmatprep.subr.mxu0 0.0
    %v675 = vand.u32 %v33, 4294901760
    %v676 = vsub.f32 %v33, %v675
    %v677 = vand.u32 %v676, 4294901760
    %678 = vmatpush1.msra.mxu0 %v677
    %679 = vmatprep.subr.mxu0 0.0
    %680 = vmatpush1.msra.mxu0 0.0
    %681 = vmatprep.subr.mxu0 0.0
    %682 = vmatpush1.msra.mxu0 0.0
    %683 = vmatprep.subr.mxu0 0.0
    %684 = vmatpush1.msra.mxu0 0.0
    %685 = vmatprep.subr.mxu0 0.0
    %686 = vmatpush1.msra.mxu0 0.0
    %687 = vmatprep.subr.mxu0 0.0
    %688 = vmatpush1.msra.mxu0 0.0
    %689 = vmatprep.subr.mxu0 0.0
    %690 = vmatpush1.msra.mxu0 0.0
    %691 = vmatprep.subr.mxu0 0.0
    %692 = vmatpush1.msra.mxu0 0.0
    %693 = vmatprep.subr.mxu0 0.0
    %694 = vmatpush1.msra.mxu0 0.0
    %695 = vmatprep.subr.mxu0 0.0
    %696 = vmatpush1.msra.mxu0 0.0
    %697 = vmatprep.subr.mxu0 0.0
    %698 = vmatpush1.msra.mxu0 0.0
    %699 = vmatprep.subr.mxu0 0.0
    %700 = vmatpush1.msra.mxu0 0.0
    %701 = vmatprep.subr.mxu0 0.0
    %702 = vmatpush1.msra.mxu0 0.0
    %703 = vmatprep.subr.mxu0 0.0
    %704 = vmatpush1.msra.mxu0 0.0
    %705 = vmatprep.subr.mxu0 0.0
    %706 = vmatpush1.msra.mxu0 0.0
    %707 = vmatprep.subr.mxu0 0.0
    %708 = vmatpush1.msra.mxu0 0.0
    %709 = vmatprep.subr.mxu0 0.0
    %710 = vmatpush1.msra.mxu0 0.0
    %711 = vmatprep.subr.mxu0 0.0
    %712 = vmatpush1.msra.mxu0 0.0
    %713 = vmatprep.subr.mxu0 0.0
    %714 = vmatpush1.msra.mxu0 0.0
    %715 = vmatprep.subr.mxu0 0.0
    %716 = vmatpush1.msra.mxu0 0.0
    %717 = vmatprep.subr.mxu0 0.0
    %718 = vmatpush1.msra.mxu0 0.0
    %719 = vmatprep.subr.mxu0 0.0
    %720 = vmatpush1.msra.mxu0 0.0
    %721 = vmatprep.subr.mxu0 0.0
    %722 = vmatpush1.msra.mxu0 0.0
    %723 = vmatprep.subr.mxu0 0.0
    %724 = vmatpush1.msra.mxu0 0.0
    %725 = vmatprep.subr.mxu0 0.0
    %726 = vmatpush1.msra.mxu0 0.0
    %727 = vmatprep.subr.mxu0 0.0
    %728 = vmatpush1.msra.mxu0 0.0
    %729 = vmatprep.subr.mxu0 0.0
    %730 = vmatpush1.msra.mxu0 0.0
    %731 = vmatprep.subr.mxu0 0.0
    %732 = vmatpush1.msra.mxu0 0.0
    %733 = vmatprep.subr.mxu0 0.0
    %734 = vmatpush1.msra.mxu0 0.0
    %735 = vmatprep.mubr.f32.mxu0 0.0
    %v736 = vand.u32 %v92, 4294901760
    %737 = vmatmul.mubr.f32.gmra.mrb[0].mxu0 %v736
    %v738 = vpop.f32.mrb[0].mxu0
    %v739 = vadd.f32 %v600, %v738
    %v740 = vpop.f32.mrb[0].mxu0
    %741 = vmatprep.mubr.f32.mxu0 0.0
    %v742 = vand.u32 %v95, 4294901760
    %743 = vmatmul.mubr.f32.gmra.mrb[0].mxu0 %v742
    %v744 = vpop.f32.mrb[0].mxu0
    %v745 = vadd.f32 %v608, %v744
    %v746 = vpop.f32.mrb[0].mxu0
    %747 = vmatprep.mubr.f32.mxu0 0.0
    %v748 = vand.u32 %v98, 4294901760
    %749 = vmatmul.mubr.f32.gmra.mrb[0].mxu0 %v748
    %v750 = vpop.f32.mrb[0].mxu0
    %v751 = vadd.f32 %v616, %v750
    %v752 = vpop.f32.mrb[0].mxu0
    %753 = vmatprep.mubr.f32.mxu0 0.0
    %v754 = vand.u32 %v101, 4294901760
    %755 = vmatmul.mubr.f32.gmra.mrb[0].mxu0 %v754
    %v756 = vpop.f32.mrb[0].mxu0
    %v757 = vadd.f32 %v624, %v756
    %v758 = vpop.f32.mrb[0].mxu0
    %759 = vmatprep.mubr.f32.mxu0 0.0
    %v760 = vand.u32 %v104, 4294901760
    %761 = vmatmul.mubr.f32.gmra.mrb[0].mxu0 %v760
    %v762 = vpop.f32.mrb[0].mxu0
    %v763 = vadd.f32 %v632, %v762
    %v764 = vpop.f32.mrb[0].mxu0
    %765 = vmatprep.mubr.f32.mxu0 0.0
    %v766 = vand.u32 %v107, 4294901760
    %767 = vmatmul.mubr.f32.gmra.mrb[0].mxu0 %v766
    %v768 = vpop.f32.mrb[0].mxu0
    %v769 = vadd.f32 %v640, %v768
    %v770 = vpop.f32.mrb[0].mxu0
    %771 = vmatprep.mubr.f32.mxu0 0.0
    %v772 = vand.u32 %v110, 4294901760
    %773 = vmatmul.mubr.f32.gmra.mrb[0].mxu0 %v772
    %v774 = vpop.f32.mrb[0].mxu0
    %v775 = vadd.f32 %v648, %v774
    %v776 = vpop.f32.mrb[0].mxu0
    %777 = vmatprep.mubr.f32.mxu0 0.0
    %v778 = vand.u32 %v113, 4294901760
    %779 = vmatmul.mubr.f32.gmra.mrb[0].mxu0 %v778
    %v780 = vpop.f32.mrb[0].mxu0
    %v781 = vadd.f32 %v656, %v780
    %v782 = vpop.f32.mrb[0].mxu0
    %783 = vdwg.mxu0
    %784 = vmatprep.subr.mxu0 0.0
    %v785 = vand.u32 %v30, 4294901760
    %786 = vmatpush1.msra.mxu0 %v785
    %787 = vmatprep.subr.mxu0 0.0
    %v788 = vand.u32 %v31, 4294901760
    %789 = vmatpush1.msra.mxu0 %v788
    %790 = vmatprep.subr.mxu0 0.0
    %v791 = vand.u32 %v32, 4294901760
    %792 = vmatpush1.msra.mxu0 %v791
    %793 = vmatprep.subr.mxu0 0.0
    %v794 = vand.u32 %v33, 4294901760
    %795 = vmatpush1.msra.mxu0 %v794
    %796 = vmatprep.subr.mxu0 0.0
    %797 = vmatpush1.msra.mxu0 0.0
    %798 = vmatprep.subr.mxu0 0.0
    %799 = vmatpush1.msra.mxu0 0.0
    %800 = vmatprep.subr.mxu0 0.0
    %801 = vmatpush1.msra.mxu0 0.0
    %802 = vmatprep.subr.mxu0 0.0
    %803 = vmatpush1.msra.mxu0 0.0
    %804 = vmatprep.subr.mxu0 0.0
    %805 = vmatpush1.msra.mxu0 0.0
    %806 = vmatprep.subr.mxu0 0.0
    %807 = vmatpush1.msra.mxu0 0.0
    %808 = vmatprep.subr.mxu0 0.0
    %809 = vmatpush1.msra.mxu0 0.0
    %810 = vmatprep.subr.mxu0 0.0
    %811 = vmatpush1.msra.mxu0 0.0
    %812 = vmatprep.subr.mxu0 0.0
    %813 = vmatpush1.msra.mxu0 0.0
    %814 = vmatprep.subr.mxu0 0.0
    %815 = vmatpush1.msra.mxu0 0.0
    %816 = vmatprep.subr.mxu0 0.0
    %817 = vmatpush1.msra.mxu0 0.0
    %818 = vmatprep.subr.mxu0 0.0
    %819 = vmatpush1.msra.mxu0 0.0
    %820 = vmatprep.subr.mxu0 0.0
    %821 = vmatpush1.msra.mxu0 0.0
    %822 = vmatprep.subr.mxu0 0.0
    %823 = vmatpush1.msra.mxu0 0.0
    %824 = vmatprep.subr.mxu0 0.0
    %825 = vmatpush1.msra.mxu0 0.0
    %826 = vmatprep.subr.mxu0 0.0
    %827 = vmatpush1.msra.mxu0 0.0
    %828 = vmatprep.subr.mxu0 0.0
    %829 = vmatpush1.msra.mxu0 0.0
    %830 = vmatprep.subr.mxu0 0.0
    %831 = vmatpush1.msra.mxu0 0.0
    %832 = vmatprep.subr.mxu0 0.0
    %833 = vmatpush1.msra.mxu0 0.0
    %834 = vmatprep.subr.mxu0 0.0
    %835 = vmatpush1.msra.mxu0 0.0
    %836 = vmatprep.subr.mxu0 0.0
    %837 = vmatpush1.msra.mxu0 0.0
    %838 = vmatprep.subr.mxu0 0.0
    %839 = vmatpush1.msra.mxu0 0.0
    %840 = vmatprep.subr.mxu0 0.0
    %841 = vmatpush1.msra.mxu0 0.0
    %842 = vmatprep.subr.mxu0 0.0
    %843 = vmatpush1.msra.mxu0 0.0
    %844 = vmatprep.subr.mxu0 0.0
    %845 = vmatpush1.msra.mxu0 0.0
    %846 = vmatprep.subr.mxu0 0.0
    %847 = vmatpush1.msra.mxu0 0.0
    %848 = vmatprep.subr.mxu0 0.0
    %849 = vmatpush1.msra.mxu0 0.0
    %850 = vmatprep.subr.mxu0 0.0
    %851 = vmatpush1.msra.mxu0 0.0
    %852 = vmatprep.mubr.f32.mxu0 0.0
    %v853 = vand.u32 %v92, 4294901760
    %854 = vmatmul.mubr.f32.gmra.mrb[0].mxu0 %v853
    %v855 = vpop.f32.mrb[0].mxu0
    %v856 = vadd.f32 %v739, %v855
    %v857 = vpop.f32.mrb[0].mxu0
    %858 = vmatprep.mubr.f32.mxu0 0.0
    %v859 = vand.u32 %v95, 4294901760
    %860 = vmatmul.mubr.f32.gmra.mrb[0].mxu0 %v859
    %v861 = vpop.f32.mrb[0].mxu0
    %v862 = vadd.f32 %v745, %v861
    %v863 = vpop.f32.mrb[0].mxu0
    %864 = vmatprep.mubr.f32.mxu0 0.0
    %v865 = vand.u32 %v98, 4294901760
    %866 = vmatmul.mubr.f32.gmra.mrb[0].mxu0 %v865
    %v867 = vpop.f32.mrb[0].mxu0
    %v868 = vadd.f32 %v751, %v867
    %v869 = vpop.f32.mrb[0].mxu0
    %870 = vmatprep.mubr.f32.mxu0 0.0
    %v871 = vand.u32 %v101, 4294901760
    %872 = vmatmul.mubr.f32.gmra.mrb[0].mxu0 %v871
    %v873 = vpop.f32.mrb[0].mxu0
    %v874 = vadd.f32 %v757, %v873
    %v875 = vpop.f32.mrb[0].mxu0
    %876 = vmatprep.mubr.f32.mxu0 0.0
    %v877 = vand.u32 %v104, 4294901760
    %878 = vmatmul.mubr.f32.gmra.mrb[0].mxu0 %v877
    %v879 = vpop.f32.mrb[0].mxu0
    %v880 = vadd.f32 %v763, %v879
    %v881 = vpop.f32.mrb[0].mxu0
    %882 = vmatprep.mubr.f32.mxu0 0.0
    %v883 = vand.u32 %v107, 4294901760
    %884 = vmatmul.mubr.f32.gmra.mrb[0].mxu0 %v883
    %v885 = vpop.f32.mrb[0].mxu0
    %v886 = vadd.f32 %v769, %v885
    %v887 = vpop.f32.mrb[0].mxu0
    %888 = vmatprep.mubr.f32.mxu0 0.0
    %v889 = vand.u32 %v110, 4294901760
    %890 = vmatmul.mubr.f32.gmra.mrb[0].mxu0 %v889
    %v891 = vpop.f32.mrb[0].mxu0
    %v892 = vadd.f32 %v775, %v891
    %v893 = vpop.f32.mrb[0].mxu0
    %894 = vmatprep.mubr.f32.mxu0 0.0
    %v895 = vand.u32 %v113, 4294901760
    %896 = vmatmul.mubr.f32.gmra.mrb[0].mxu0 %v895
    %v897 = vpop.f32.mrb[0].mxu0
    %v898 = vadd.f32 %v781, %v897
    %v899 = vpop.f32.mrb[0].mxu0
    %900 = vdwg.mxu0
    %vm901 = vcmp.gt.f32.partialorder %v856, 20.0
    %vm902 = vcmp.gt.f32.partialorder %v862, 20.0
    %vm903 = vcmp.gt.f32.partialorder %v868, 20.0
    %vm904 = vcmp.gt.f32.partialorder %v874, 20.0
    %vm905 = vcmp.gt.f32.partialorder %v880, 20.0
    %vm906 = vcmp.gt.f32.partialorder %v886, 20.0
    %vm907 = vcmp.gt.f32.partialorder %v892, 20.0
    %vm908 = vcmp.gt.f32.partialorder %v898, 20.0
    %v909 = vmin.f32 %v856, 20.0
    %v910 = vmin.f32 %v862, 20.0
    %v911 = vmin.f32 %v868, 20.0
    %v912 = vmin.f32 %v874, 20.0
    %v913 = vmin.f32 %v880, 20.0
    %v914 = vmin.f32 %v886, 20.0
    %v915 = vmin.f32 %v892, 20.0
    %v916 = vmin.f32 %v898, 20.0
    %v917 = vmul.f32 %v909, 1.442695
    %v918 = vpow.pop %v917
    %v919 = vmul.f32 %v910, 1.442695
    %v920 = vpow.pop %v919
    %v921 = vmul.f32 %v911, 1.442695
    %v922 = vpow.pop %v921
    %v923 = vmul.f32 %v912, 1.442695
    %v924 = vpow.pop %v923
    %v925 = vmul.f32 %v913, 1.442695
    %v926 = vpow.pop %v925
    %v927 = vmul.f32 %v914, 1.442695
    %v928 = vpow.pop %v927
    %v929 = vmul.f32 %v915, 1.442695
    %v930 = vpow.pop %v929
    %v931 = vmul.f32 %v916, 1.442695
    %v932 = vpow.pop %v931
    %v933 = vadd.f32 %v918, 1.0
    %v934 = vlog2.pop %v933
    %v935 = vmul.f32 %v934, 0.6931472
    %v936 = vmul.f32 -0.5, %v918
    %v937 = vadd.f32 %v936, 1.0
    %v938 = vmul.f32 %v937, %v918
    %v939 = vand.u32 2147483647, %v918
    %vm940 = vcmp.lt.f32.partialorder %v939, 0.0004427343
    %v941 = vsel %vm940, %v938, %v935
    %v942 = vadd.f32 %v920, 1.0
    %v943 = vlog2.pop %v942
    %v944 = vmul.f32 %v943, 0.6931472
    %v945 = vmul.f32 -0.5, %v920
    %v946 = vadd.f32 %v945, 1.0
    %v947 = vmul.f32 %v946, %v920
    %v948 = vand.u32 2147483647, %v920
    %vm949 = vcmp.lt.f32.partialorder %v948, 0.0004427343
    %v950 = vsel %vm949, %v947, %v944
    %v951 = vadd.f32 %v922, 1.0
    %v952 = vlog2.pop %v951
    %v953 = vmul.f32 %v952, 0.6931472
    %v954 = vmul.f32 -0.5, %v922
    %v955 = vadd.f32 %v954, 1.0
    %v956 = vmul.f32 %v955, %v922
    %v957 = vand.u32 2147483647, %v922
    %vm958 = vcmp.lt.f32.partialorder %v957, 0.0004427343
    %v959 = vsel %vm958, %v956, %v953
    %v960 = vadd.f32 %v924, 1.0
    %v961 = vlog2.pop %v960
    %v962 = vmul.f32 %v961, 0.6931472
    %v963 = vmul.f32 -0.5, %v924
    %v964 = vadd.f32 %v963, 1.0
    %v965 = vmul.f32 %v964, %v924
    %v966 = vand.u32 2147483647, %v924
    %vm967 = vcmp.lt.f32.partialorder %v966, 0.0004427343
    %v968 = vsel %vm967, %v965, %v962
    %v969 = vadd.f32 %v926, 1.0
    %v970 = vlog2.pop %v969
    %v971 = vmul.f32 %v970, 0.6931472
    %v972 = vmul.f32 -0.5, %v926
    %v973 = vadd.f32 %v972, 1.0
    %v974 = vmul.f32 %v973, %v926
    %v975 = vand.u32 2147483647, %v926
    %vm976 = vcmp.lt.f32.partialorder %v975, 0.0004427343
    %v977 = vsel %vm976, %v974, %v971
    %v978 = vadd.f32 %v928, 1.0
    %v979 = vlog2.pop %v978
    %v980 = vmul.f32 %v979, 0.6931472
    %v981 = vmul.f32 -0.5, %v928
    %v982 = vadd.f32 %v981, 1.0
    %v983 = vmul.f32 %v982, %v928
    %v984 = vand.u32 2147483647, %v928
    %vm985 = vcmp.lt.f32.partialorder %v984, 0.0004427343
    %v986 = vsel %vm985, %v983, %v980
    %v987 = vadd.f32 %v930, 1.0
    %v988 = vlog2.pop %v987
    %v989 = vmul.f32 %v988, 0.6931472
    %v990 = vmul.f32 -0.5, %v930
    %v991 = vadd.f32 %v990, 1.0
    %v992 = vmul.f32 %v991, %v930
    %v993 = vand.u32 2147483647, %v930
    %vm994 = vcmp.lt.f32.partialorder %v993, 0.0004427343
    %v995 = vsel %vm994, %v992, %v989
    %v996 = vadd.f32 %v932, 1.0
    %v997 = vlog2.pop %v996
    %v998 = vmul.f32 %v997, 0.6931472
    %v999 = vmul.f32 -0.5, %v932
    %v1000 = vadd.f32 %v999, 1.0
    %v1001 = vmul.f32 %v1000, %v932
    %v1002 = vand.u32 2147483647, %v932
    %vm1003 = vcmp.lt.f32.partialorder %v1002, 0.0004427343
    %v1004 = vsel %vm1003, %v1001, %v998
    %v1005 = vsel %vm901, %v856, %v941
    %v1006 = vsel %vm902, %v862, %v950
    %v1007 = vsel %vm903, %v868, %v959
    %v1008 = vsel %vm904, %v874, %v968
    %v1009 = vsel %vm905, %v880, %v977
    %v1010 = vsel %vm906, %v886, %v986
    %v1011 = vsel %vm907, %v892, %v995
    %v1012 = vsel %vm908, %v898, %v1004
    %v1013 = vld [vmem:[%s4] sm:$0xff]
    %v1014 = vld [vmem:[%s4 + $0x8] sm:$0xff]
    %v1015 = vld [vmem:[%s4 + $0x10] sm:$0xff]
    %v1016 = vld [vmem:[%s4 + $0x18] sm:$0xff]
    %v1017 = vld [vmem:[%s4 + $0x20] sm:$0xff]
    %v1018 = vld [vmem:[%s4 + $0x28] sm:$0xff]
    %v1019 = vld [vmem:[%s4 + $0x30] sm:$0xff]
    %v1020 = vld [vmem:[%s4 + $0x38] sm:$0xff]
    %v1021 = vld [vmem:[%s5] sm:$0xff]
    %v1022 = vld [vmem:[%s5 + $0x8] sm:$0xff]
    %v1023 = vld [vmem:[%s5 + $0x10] sm:$0xff]
    %v1024 = vld [vmem:[%s5 + $0x18] sm:$0xff]
    %v1025 = vld [vmem:[%s5 + $0x20] sm:$0xff]
    %v1026 = vld [vmem:[%s5 + $0x28] sm:$0xff]
    %v1027 = vld [vmem:[%s5 + $0x30] sm:$0xff]
    %v1028 = vld [vmem:[%s5 + $0x38] sm:$0xff]
    %1030 = vset.pattern.permute.xlu0 0
    %1031 = vperm.xlu0 %1030, %v1021
    %v1032 = vpop.permute.xlu0 %1031
    %1035 = vset.pattern.permute.xlu0 0
    %1036 = vperm.xlu0 %1035, %v1022
    %v1037 = vpop.permute.xlu0 %1036
    %1040 = vset.pattern.permute.xlu0 0
    %1041 = vperm.xlu0 %1040, %v1023
    %v1042 = vpop.permute.xlu0 %1041
    %1045 = vset.pattern.permute.xlu0 0
    %1046 = vperm.xlu0 %1045, %v1024
    %v1047 = vpop.permute.xlu0 %1046
    %1050 = vset.pattern.permute.xlu0 0
    %1051 = vperm.xlu0 %1050, %v1025
    %v1052 = vpop.permute.xlu0 %1051
    %1055 = vset.pattern.permute.xlu0 0
    %1056 = vperm.xlu0 %1055, %v1026
    %v1057 = vpop.permute.xlu0 %1056
    %1060 = vset.pattern.permute.xlu0 0
    %1061 = vperm.xlu0 %1060, %v1027
    %v1062 = vpop.permute.xlu0 %1061
    %1065 = vset.pattern.permute.xlu0 0
    %1066 = vperm.xlu0 %1065, %v1028
    %v1067 = vpop.permute.xlu0 %1066
    %vm1069 = vcmask 523264
    %v1071 = vsel %vm1069, %v1013, 0
    %v1074 = vsel %vm1069, %v1014, 0
    %v1077 = vsel %vm1069, %v1015, 0
    %v1080 = vsel %vm1069, %v1016, 0
    %v1083 = vsel %vm1069, %v1017, 0
    %v1086 = vsel %vm1069, %v1018, 0
    %v1089 = vsel %vm1069, %v1019, 0
    %v1092 = vsel %vm1069, %v1020, 0
    %1094 = vmatprep.subr.mxu0 0.0
    %v1095 = vand.u32 %v1005, 4294901760
    %1096 = vmatpush1.msra.mxu0 %v1095
    %1097 = vmatprep.subr.mxu0 0.0
    %v1098 = vand.u32 %v1006, 4294901760
    %1099 = vmatpush1.msra.mxu0 %v1098
    %1100 = vmatprep.subr.mxu0 0.0
    %v1101 = vand.u32 %v1007, 4294901760
    %1102 = vmatpush1.msra.mxu0 %v1101
    %1103 = vmatprep.subr.mxu0 0.0
    %v1104 = vand.u32 %v1008, 4294901760
    %1105 = vmatpush1.msra.mxu0 %v1104
    %1106 = vmatprep.subr.mxu0 0.0
    %v1107 = vand.u32 %v1009, 4294901760
    %1108 = vmatpush1.msra.mxu0 %v1107
    %1109 = vmatprep.subr.mxu0 0.0
    %v1110 = vand.u32 %v1010, 4294901760
    %1111 = vmatpush1.msra.mxu0 %v1110
    %1112 = vmatprep.subr.mxu0 0.0
    %v1113 = vand.u32 %v1011, 4294901760
    %1114 = vmatpush1.msra.mxu0 %v1113
    %1115 = vmatprep.subr.mxu0 0.0
    %v1116 = vand.u32 %v1012, 4294901760
    %1117 = vmatpush1.msra.mxu0 %v1116
    %1118 = vmatprep.subr.mxu0 0.0
    %1119 = vmatpush1.msra.mxu0 0.0
    %1120 = vmatprep.subr.mxu0 0.0
    %1121 = vmatpush1.msra.mxu0 0.0
    %1122 = vmatprep.subr.mxu0 0.0
    %1123 = vmatpush1.msra.mxu0 0.0
    %1124 = vmatprep.subr.mxu0 0.0
    %1125 = vmatpush1.msra.mxu0 0.0
    %1126 = vmatprep.subr.mxu0 0.0
    %1127 = vmatpush1.msra.mxu0 0.0
    %1128 = vmatprep.subr.mxu0 0.0
    %1129 = vmatpush1.msra.mxu0 0.0
    %1130 = vmatprep.subr.mxu0 0.0
    %1131 = vmatpush1.msra.mxu0 0.0
    %1132 = vmatprep.subr.mxu0 0.0
    %1133 = vmatpush1.msra.mxu0 0.0
    %1134 = vmatprep.subr.mxu0 0.0
    %1135 = vmatpush1.msra.mxu0 0.0
    %1136 = vmatprep.subr.mxu0 0.0
    %1137 = vmatpush1.msra.mxu0 0.0
    %1138 = vmatprep.subr.mxu0 0.0
    %1139 = vmatpush1.msra.mxu0 0.0
    %1140 = vmatprep.subr.mxu0 0.0
    %1141 = vmatpush1.msra.mxu0 0.0
    %1142 = vmatprep.subr.mxu0 0.0
    %1143 = vmatpush1.msra.mxu0 0.0
    %1144 = vmatprep.subr.mxu0 0.0
    %1145 = vmatpush1.msra.mxu0 0.0
    %1146 = vmatprep.subr.mxu0 0.0
    %1147 = vmatpush1.msra.mxu0 0.0
    %1148 = vmatprep.subr.mxu0 0.0
    %1149 = vmatpush1.msra.mxu0 0.0
    %1150 = vmatprep.subr.mxu0 0.0
    %1151 = vmatpush1.msra.mxu0 0.0
    %1152 = vmatprep.subr.mxu0 0.0
    %1153 = vmatpush1.msra.mxu0 0.0
    %1154 = vmatprep.subr.mxu0 0.0
    %1155 = vmatpush1.msra.mxu0 0.0
    %1156 = vmatprep.subr.mxu0 0.0
    %1157 = vmatpush1.msra.mxu0 0.0
    %1158 = vmatprep.subr.mxu0 0.0
    %1159 = vmatpush1.msra.mxu0 0.0
    %1160 = vmatprep.subr.mxu0 0.0
    %1161 = vmatpush1.msra.mxu0 0.0
    %1162 = vmatprep.subr.mxu0 0.0
    %1163 = vmatpush1.msra.mxu0 0.0
    %1164 = vmatprep.subr.mxu0 0.0
    %1165 = vmatpush1.msra.mxu0 0.0
    %1166 = vmatprep.mubr.f32.mxu0 0.0
    %v1167 = vand.u32 %v1071, 4294901760
    %v1168 = vsub.f32 %v1071, %v1167
    %v1169 = vand.u32 %v1168, 4294901760
    %v1170 = vsub.f32 %v1168, %v1169
    %v1171 = vand.u32 %v1170, 4294901760
    %1172 = vmatmul.mubr.f32.gmra.mrb[0].mxu0 %v1171
    %v1173 = vpop.f32.mrb[0].mxu0
    %v1174 = vadd.f32 %v1032, %v1173
    %v1175 = vpop.f32.mrb[0].mxu0
    %1176 = vmatprep.mubr.f32.mxu0 0.0
    %v1177 = vand.u32 %v1074, 4294901760
    %v1178 = vsub.f32 %v1074, %v1177
    %v1179 = vand.u32 %v1178, 4294901760
    %v1180 = vsub.f32 %v1178, %v1179
    %v1181 = vand.u32 %v1180, 4294901760
    %1182 = vmatmul.mubr.f32.gmra.mrb[0].mxu0 %v1181
    %v1183 = vpop.f32.mrb[0].mxu0
    %v1184 = vadd.f32 %v1037, %v1183
    %v1185 = vpop.f32.mrb[0].mxu0
    %1186 = vmatprep.mubr.f32.mxu0 0.0
    %v1187 = vand.u32 %v1077, 4294901760
    %v1188 = vsub.f32 %v1077, %v1187
    %v1189 = vand.u32 %v1188, 4294901760
    %v1190 = vsub.f32 %v1188, %v1189
    %v1191 = vand.u32 %v1190, 4294901760
    %1192 = vmatmul.mubr.f32.gmra.mrb[0].mxu0 %v1191
    %v1193 = vpop.f32.mrb[0].mxu0
    %v1194 = vadd.f32 %v1042, %v1193
    %v1195 = vpop.f32.mrb[0].mxu0
    %1196 = vmatprep.mubr.f32.mxu0 0.0
    %v1197 = vand.u32 %v1080, 4294901760
    %v1198 = vsub.f32 %v1080, %v1197
    %v1199 = vand.u32 %v1198, 4294901760
    %v1200 = vsub.f32 %v1198, %v1199
    %v1201 = vand.u32 %v1200, 4294901760
    %1202 = vmatmul.mubr.f32.gmra.mrb[0].mxu0 %v1201
    %v1203 = vpop.f32.mrb[0].mxu0
    %v1204 = vadd.f32 %v1047, %v1203
    %v1205 = vpop.f32.mrb[0].mxu0
    %1206 = vmatprep.mubr.f32.mxu0 0.0
    %v1207 = vand.u32 %v1083, 4294901760
    %v1208 = vsub.f32 %v1083, %v1207
    %v1209 = vand.u32 %v1208, 4294901760
    %v1210 = vsub.f32 %v1208, %v1209
    %v1211 = vand.u32 %v1210, 4294901760
    %1212 = vmatmul.mubr.f32.gmra.mrb[0].mxu0 %v1211
    %v1213 = vpop.f32.mrb[0].mxu0
    %v1214 = vadd.f32 %v1052, %v1213
    %v1215 = vpop.f32.mrb[0].mxu0
    %1216 = vmatprep.mubr.f32.mxu0 0.0
    %v1217 = vand.u32 %v1086, 4294901760
    %v1218 = vsub.f32 %v1086, %v1217
    %v1219 = vand.u32 %v1218, 4294901760
    %v1220 = vsub.f32 %v1218, %v1219
    %v1221 = vand.u32 %v1220, 4294901760
    %1222 = vmatmul.mubr.f32.gmra.mrb[0].mxu0 %v1221
    %v1223 = vpop.f32.mrb[0].mxu0
    %v1224 = vadd.f32 %v1057, %v1223
    %v1225 = vpop.f32.mrb[0].mxu0
    %1226 = vmatprep.mubr.f32.mxu0 0.0
    %v1227 = vand.u32 %v1089, 4294901760
    %v1228 = vsub.f32 %v1089, %v1227
    %v1229 = vand.u32 %v1228, 4294901760
    %v1230 = vsub.f32 %v1228, %v1229
    %v1231 = vand.u32 %v1230, 4294901760
    %1232 = vmatmul.mubr.f32.gmra.mrb[0].mxu0 %v1231
    %v1233 = vpop.f32.mrb[0].mxu0
    %v1234 = vadd.f32 %v1062, %v1233
    %v1235 = vpop.f32.mrb[0].mxu0
    %1236 = vmatprep.mubr.f32.mxu0 0.0
    %v1237 = vand.u32 %v1092, 4294901760
    %v1238 = vsub.f32 %v1092, %v1237
    %v1239 = vand.u32 %v1238, 4294901760
    %v1240 = vsub.f32 %v1238, %v1239
    %v1241 = vand.u32 %v1240, 4294901760
    %1242 = vmatmul.mubr.f32.gmra.mrb[0].mxu0 %v1241
    %v1243 = vpop.f32.mrb[0].mxu0
    %v1244 = vadd.f32 %v1067, %v1243
    %v1245 = vpop.f32.mrb[0].mxu0
    %1246 = vdwg.mxu0
    %1247 = vmatprep.subr.mxu0 0.0
    %v1248 = vand.u32 %v1005, 4294901760
    %v1249 = vsub.f32 %v1005, %v1248
    %v1250 = vand.u32 %v1249, 4294901760
    %v1251 = vsub.f32 %v1249, %v1250
    %v1252 = vand.u32 %v1251, 4294901760
    %1253 = vmatpush1.msra.mxu0 %v1252
    %1254 = vmatprep.subr.mxu0 0.0
    %v1255 = vand.u32 %v1006, 4294901760
    %v1256 = vsub.f32 %v1006, %v1255
    %v1257 = vand.u32 %v1256, 4294901760
    %v1258 = vsub.f32 %v1256, %v1257
    %v1259 = vand.u32 %v1258, 4294901760
    %1260 = vmatpush1.msra.mxu0 %v1259
    %1261 = vmatprep.subr.mxu0 0.0
    %v1262 = vand.u32 %v1007, 4294901760
    %v1263 = vsub.f32 %v1007, %v1262
    %v1264 = vand.u32 %v1263, 4294901760
    %v1265 = vsub.f32 %v1263, %v1264
    %v1266 = vand.u32 %v1265, 4294901760
    %1267 = vmatpush1.msra.mxu0 %v1266
    %1268 = vmatprep.subr.mxu0 0.0
    %v1269 = vand.u32 %v1008, 4294901760
    %v1270 = vsub.f32 %v1008, %v1269
    %v1271 = vand.u32 %v1270, 4294901760
    %v1272 = vsub.f32 %v1270, %v1271
    %v1273 = vand.u32 %v1272, 4294901760
    %1274 = vmatpush1.msra.mxu0 %v1273
    %1275 = vmatprep.subr.mxu0 0.0
    %v1276 = vand.u32 %v1009, 4294901760
    %v1277 = vsub.f32 %v1009, %v1276
    %v1278 = vand.u32 %v1277, 4294901760
    %v1279 = vsub.f32 %v1277, %v1278
    %v1280 = vand.u32 %v1279, 4294901760
    %1281 = vmatpush1.msra.mxu0 %v1280
    %1282 = vmatprep.subr.mxu0 0.0
    %v1283 = vand.u32 %v1010, 4294901760
    %v1284 = vsub.f32 %v1010, %v1283
    %v1285 = vand.u32 %v1284, 4294901760
    %v1286 = vsub.f32 %v1284, %v1285
    %v1287 = vand.u32 %v1286, 4294901760
    %1288 = vmatpush1.msra.mxu0 %v1287
    %1289 = vmatprep.subr.mxu0 0.0
    %v1290 = vand.u32 %v1011, 4294901760
    %v1291 = vsub.f32 %v1011, %v1290
    %v1292 = vand.u32 %v1291, 4294901760
    %v1293 = vsub.f32 %v1291, %v1292
    %v1294 = vand.u32 %v1293, 4294901760
    %1295 = vmatpush1.msra.mxu0 %v1294
    %1296 = vmatprep.subr.mxu0 0.0
    %v1297 = vand.u32 %v1012, 4294901760
    %v1298 = vsub.f32 %v1012, %v1297
    %v1299 = vand.u32 %v1298, 4294901760
    %v1300 = vsub.f32 %v1298, %v1299
    %v1301 = vand.u32 %v1300, 4294901760
    %1302 = vmatpush1.msra.mxu0 %v1301
    %1303 = vmatprep.subr.mxu0 0.0
    %1304 = vmatpush1.msra.mxu0 0.0
    %1305 = vmatprep.subr.mxu0 0.0
    %1306 = vmatpush1.msra.mxu0 0.0
    %1307 = vmatprep.subr.mxu0 0.0
    %1308 = vmatpush1.msra.mxu0 0.0
    %1309 = vmatprep.subr.mxu0 0.0
    %1310 = vmatpush1.msra.mxu0 0.0
    %1311 = vmatprep.subr.mxu0 0.0
    %1312 = vmatpush1.msra.mxu0 0.0
    %1313 = vmatprep.subr.mxu0 0.0
    %1314 = vmatpush1.msra.mxu0 0.0
    %1315 = vmatprep.subr.mxu0 0.0
    %1316 = vmatpush1.msra.mxu0 0.0
    %1317 = vmatprep.subr.mxu0 0.0
    %1318 = vmatpush1.msra.mxu0 0.0
    %1319 = vmatprep.subr.mxu0 0.0
    %1320 = vmatpush1.msra.mxu0 0.0
    %1321 = vmatprep.subr.mxu0 0.0
    %1322 = vmatpush1.msra.mxu0 0.0
    %1323 = vmatprep.subr.mxu0 0.0
    %1324 = vmatpush1.msra.mxu0 0.0
    %1325 = vmatprep.subr.mxu0 0.0
    %1326 = vmatpush1.msra.mxu0 0.0
    %1327 = vmatprep.subr.mxu0 0.0
    %1328 = vmatpush1.msra.mxu0 0.0
    %1329 = vmatprep.subr.mxu0 0.0
    %1330 = vmatpush1.msra.mxu0 0.0
    %1331 = vmatprep.subr.mxu0 0.0
    %1332 = vmatpush1.msra.mxu0 0.0
    %1333 = vmatprep.subr.mxu0 0.0
    %1334 = vmatpush1.msra.mxu0 0.0
    %1335 = vmatprep.subr.mxu0 0.0
    %1336 = vmatpush1.msra.mxu0 0.0
    %1337 = vmatprep.subr.mxu0 0.0
    %1338 = vmatpush1.msra.mxu0 0.0
    %1339 = vmatprep.subr.mxu0 0.0
    %1340 = vmatpush1.msra.mxu0 0.0
    %1341 = vmatprep.subr.mxu0 0.0
    %1342 = vmatpush1.msra.mxu0 0.0
    %1343 = vmatprep.subr.mxu0 0.0
    %1344 = vmatpush1.msra.mxu0 0.0
    %1345 = vmatprep.subr.mxu0 0.0
    %1346 = vmatpush1.msra.mxu0 0.0
    %1347 = vmatprep.subr.mxu0 0.0
    %1348 = vmatpush1.msra.mxu0 0.0
    %1349 = vmatprep.subr.mxu0 0.0
    %1350 = vmatpush1.msra.mxu0 0.0
    %1351 = vmatprep.mubr.f32.mxu0 0.0
    %v1352 = vand.u32 %v1071, 4294901760
    %1353 = vmatmul.mubr.f32.gmra.mrb[0].mxu0 %v1352
    %v1354 = vpop.f32.mrb[0].mxu0
    %v1355 = vadd.f32 %v1174, %v1354
    %v1356 = vpop.f32.mrb[0].mxu0
    %1357 = vmatprep.mubr.f32.mxu0 0.0
    %v1358 = vand.u32 %v1074, 4294901760
    %1359 = vmatmul.mubr.f32.gmra.mrb[0].mxu0 %v1358
    %v1360 = vpop.f32.mrb[0].mxu0
    %v1361 = vadd.f32 %v1184, %v1360
    %v1362 = vpop.f32.mrb[0].mxu0
    %1363 = vmatprep.mubr.f32.mxu0 0.0
    %v1364 = vand.u32 %v1077, 4294901760
    %1365 = vmatmul.mubr.f32.gmra.mrb[0].mxu0 %v1364
    %v1366 = vpop.f32.mrb[0].mxu0
    %v1367 = vadd.f32 %v1194, %v1366
    %v1368 = vpop.f32.mrb[0].mxu0
    %1369 = vmatprep.mubr.f32.mxu0 0.0
    %v1370 = vand.u32 %v1080, 4294901760
    %1371 = vmatmul.mubr.f32.gmra.mrb[0].mxu0 %v1370
    %v1372 = vpop.f32.mrb[0].mxu0
    %v1373 = vadd.f32 %v1204, %v1372
    %v1374 = vpop.f32.mrb[0].mxu0
    %1375 = vmatprep.mubr.f32.mxu0 0.0
    %v1376 = vand.u32 %v1083, 4294901760
    %1377 = vmatmul.mubr.f32.gmra.mrb[0].mxu0 %v1376
    %v1378 = vpop.f32.mrb[0].mxu0
    %v1379 = vadd.f32 %v1214, %v1378
    %v1380 = vpop.f32.mrb[0].mxu0
    %1381 = vmatprep.mubr.f32.mxu0 0.0
    %v1382 = vand.u32 %v1086, 4294901760
    %1383 = vmatmul.mubr.f32.gmra.mrb[0].mxu0 %v1382
    %v1384 = vpop.f32.mrb[0].mxu0
    %v1385 = vadd.f32 %v1224, %v1384
    %v1386 = vpop.f32.mrb[0].mxu0
    %1387 = vmatprep.mubr.f32.mxu0 0.0
    %v1388 = vand.u32 %v1089, 4294901760
    %1389 = vmatmul.mubr.f32.gmra.mrb[0].mxu0 %v1388
    %v1390 = vpop.f32.mrb[0].mxu0
    %v1391 = vadd.f32 %v1234, %v1390
    %v1392 = vpop.f32.mrb[0].mxu0
    %1393 = vmatprep.mubr.f32.mxu0 0.0
    %v1394 = vand.u32 %v1092, 4294901760
    %1395 = vmatmul.mubr.f32.gmra.mrb[0].mxu0 %v1394
    %v1396 = vpop.f32.mrb[0].mxu0
    %v1397 = vadd.f32 %v1244, %v1396
    %v1398 = vpop.f32.mrb[0].mxu0
    %1399 = vdwg.mxu0
    %1400 = vmatprep.subr.mxu0 0.0
    %v1401 = vand.u32 %v1005, 4294901760
    %v1402 = vsub.f32 %v1005, %v1401
    %1403 = vmatpush1.msra.mxu0 %v1402
    %1404 = vmatprep.subr.mxu0 0.0
    %v1405 = vand.u32 %v1006, 4294901760
    %v1406 = vsub.f32 %v1006, %v1405
    %1407 = vmatpush1.msra.mxu0 %v1406
    %1408 = vmatprep.subr.mxu0 0.0
    %v1409 = vand.u32 %v1007, 4294901760
    %v1410 = vsub.f32 %v1007, %v1409
    %1411 = vmatpush1.msra.mxu0 %v1410
    %1412 = vmatprep.subr.mxu0 0.0
    %v1413 = vand.u32 %v1008, 4294901760
    %v1414 = vsub.f32 %v1008, %v1413
    %1415 = vmatpush1.msra.mxu0 %v1414
    %1416 = vmatprep.subr.mxu0 0.0
    %v1417 = vand.u32 %v1009, 4294901760
    %v1418 = vsub.f32 %v1009, %v1417
    %1419 = vmatpush1.msra.mxu0 %v1418
    %1420 = vmatprep.subr.mxu0 0.0
    %v1421 = vand.u32 %v1010, 4294901760
    %v1422 = vsub.f32 %v1010, %v1421
    %1423 = vmatpush1.msra.mxu0 %v1422
    %1424 = vmatprep.subr.mxu0 0.0
    %v1425 = vand.u32 %v1011, 4294901760
    %v1426 = vsub.f32 %v1011, %v1425
    %1427 = vmatpush1.msra.mxu0 %v1426
    %1428 = vmatprep.subr.mxu0 0.0
    %v1429 = vand.u32 %v1012, 4294901760
    %v1430 = vsub.f32 %v1012, %v1429
    %1431 = vmatpush1.msra.mxu0 %v1430
    %1432 = vmatprep.subr.mxu0 0.0
    %1433 = vmatpush1.msra.mxu0 0.0
    %1434 = vmatprep.subr.mxu0 0.0
    %1435 = vmatpush1.msra.mxu0 0.0
    %1436 = vmatprep.subr.mxu0 0.0
    %1437 = vmatpush1.msra.mxu0 0.0
    %1438 = vmatprep.subr.mxu0 0.0
    %1439 = vmatpush1.msra.mxu0 0.0
    %1440 = vmatprep.subr.mxu0 0.0
    %1441 = vmatpush1.msra.mxu0 0.0
    %1442 = vmatprep.subr.mxu0 0.0
    %1443 = vmatpush1.msra.mxu0 0.0
    %1444 = vmatprep.subr.mxu0 0.0
    %1445 = vmatpush1.msra.mxu0 0.0
    %1446 = vmatprep.subr.mxu0 0.0
    %1447 = vmatpush1.msra.mxu0 0.0
    %1448 = vmatprep.subr.mxu0 0.0
    %1449 = vmatpush1.msra.mxu0 0.0
    %1450 = vmatprep.subr.mxu0 0.0
    %1451 = vmatpush1.msra.mxu0 0.0
    %1452 = vmatprep.subr.mxu0 0.0
    %1453 = vmatpush1.msra.mxu0 0.0
    %1454 = vmatprep.subr.mxu0 0.0
    %1455 = vmatpush1.msra.mxu0 0.0
    %1456 = vmatprep.subr.mxu0 0.0
    %1457 = vmatpush1.msra.mxu0 0.0
    %1458 = vmatprep.subr.mxu0 0.0
    %1459 = vmatpush1.msra.mxu0 0.0
    %1460 = vmatprep.subr.mxu0 0.0
    %1461 = vmatpush1.msra.mxu0 0.0
    %1462 = vmatprep.subr.mxu0 0.0
    %1463 = vmatpush1.msra.mxu0 0.0
    %1464 = vmatprep.subr.mxu0 0.0
    %1465 = vmatpush1.msra.mxu0 0.0
    %1466 = vmatprep.subr.mxu0 0.0
    %1467 = vmatpush1.msra.mxu0 0.0
    %1468 = vmatprep.subr.mxu0 0.0
    %1469 = vmatpush1.msra.mxu0 0.0
    %1470 = vmatprep.subr.mxu0 0.0
    %1471 = vmatpush1.msra.mxu0 0.0
    %1472 = vmatprep.subr.mxu0 0.0
    %1473 = vmatpush1.msra.mxu0 0.0
    %1474 = vmatprep.subr.mxu0 0.0
    %1475 = vmatpush1.msra.mxu0 0.0
    %1476 = vmatprep.subr.mxu0 0.0
    %1477 = vmatpush1.msra.mxu0 0.0
    %1478 = vmatprep.subr.mxu0 0.0
    %1479 = vmatpush1.msra.mxu0 0.0
    %1480 = vmatprep.mubr.f32.mxu0 0.0
    %v1481 = vand.u32 %v1071, 4294901760
    %v1482 = vsub.f32 %v1071, %v1481
    %1483 = vmatmul.mubr.f32.gmra.mrb[0].mxu0 %v1482
    %v1484 = vpop.f32.mrb[0].mxu0
    %v1485 = vadd.f32 %v1355, %v1484
    %v1486 = vpop.f32.mrb[0].mxu0
    %1487 = vmatprep.mubr.f32.mxu0 0.0
    %v1488 = vand.u32 %v1074, 4294901760
    %v1489 = vsub.f32 %v1074, %v1488
    %1490 = vmatmul.mubr.f32.gmra.mrb[0].mxu0 %v1489
    %v1491 = vpop.f32.mrb[0].mxu0
    %v1492 = vadd.f32 %v1361, %v1491
    %v1493 = vpop.f32.mrb[0].mxu0
    %1494 = vmatprep.mubr.f32.mxu0 0.0
    %v1495 = vand.u32 %v1077, 4294901760
    %v1496 = vsub.f32 %v1077, %v1495
    %1497 = vmatmul.mubr.f32.gmra.mrb[0].mxu0 %v1496
    %v1498 = vpop.f32.mrb[0].mxu0
    %v1499 = vadd.f32 %v1367, %v1498
    %v1500 = vpop.f32.mrb[0].mxu0
    %1501 = vmatprep.mubr.f32.mxu0 0.0
    %v1502 = vand.u32 %v1080, 4294901760
    %v1503 = vsub.f32 %v1080, %v1502
    %1504 = vmatmul.mubr.f32.gmra.mrb[0].mxu0 %v1503
    %v1505 = vpop.f32.mrb[0].mxu0
    %v1506 = vadd.f32 %v1373, %v1505
    %v1507 = vpop.f32.mrb[0].mxu0
    %1508 = vmatprep.mubr.f32.mxu0 0.0
    %v1509 = vand.u32 %v1083, 4294901760
    %v1510 = vsub.f32 %v1083, %v1509
    %1511 = vmatmul.mubr.f32.gmra.mrb[0].mxu0 %v1510
    %v1512 = vpop.f32.mrb[0].mxu0
    %v1513 = vadd.f32 %v1379, %v1512
    %v1514 = vpop.f32.mrb[0].mxu0
    %1515 = vmatprep.mubr.f32.mxu0 0.0
    %v1516 = vand.u32 %v1086, 4294901760
    %v1517 = vsub.f32 %v1086, %v1516
    %1518 = vmatmul.mubr.f32.gmra.mrb[0].mxu0 %v1517
    %v1519 = vpop.f32.mrb[0].mxu0
    %v1520 = vadd.f32 %v1385, %v1519
    %v1521 = vpop.f32.mrb[0].mxu0
    %1522 = vmatprep.mubr.f32.mxu0 0.0
    %v1523 = vand.u32 %v1089, 4294901760
    %v1524 = vsub.f32 %v1089, %v1523
    %1525 = vmatmul.mubr.f32.gmra.mrb[0].mxu0 %v1524
    %v1526 = vpop.f32.mrb[0].mxu0
    %v1527 = vadd.f32 %v1391, %v1526
    %v1528 = vpop.f32.mrb[0].mxu0
    %1529 = vmatprep.mubr.f32.mxu0 0.0
    %v1530 = vand.u32 %v1092, 4294901760
    %v1531 = vsub.f32 %v1092, %v1530
    %1532 = vmatmul.mubr.f32.gmra.mrb[0].mxu0 %v1531
    %v1533 = vpop.f32.mrb[0].mxu0
    %v1534 = vadd.f32 %v1397, %v1533
    %v1535 = vpop.f32.mrb[0].mxu0
    %1536 = vdwg.mxu0
    %1537 = vmatprep.subr.mxu0 0.0
    %v1538 = vand.u32 %v1005, 4294901760
    %1539 = vmatpush1.msra.mxu0 %v1538
    %1540 = vmatprep.subr.mxu0 0.0
    %v1541 = vand.u32 %v1006, 4294901760
    %1542 = vmatpush1.msra.mxu0 %v1541
    %1543 = vmatprep.subr.mxu0 0.0
    %v1544 = vand.u32 %v1007, 4294901760
    %1545 = vmatpush1.msra.mxu0 %v1544
    %1546 = vmatprep.subr.mxu0 0.0
    %v1547 = vand.u32 %v1008, 4294901760
    %1548 = vmatpush1.msra.mxu0 %v1547
    %1549 = vmatprep.subr.mxu0 0.0
    %v1550 = vand.u32 %v1009, 4294901760
    %1551 = vmatpush1.msra.mxu0 %v1550
    %1552 = vmatprep.subr.mxu0 0.0
    %v1553 = vand.u32 %v1010, 4294901760
    %1554 = vmatpush1.msra.mxu0 %v1553
    %1555 = vmatprep.subr.mxu0 0.0
    %v1556 = vand.u32 %v1011, 4294901760
    %1557 = vmatpush1.msra.mxu0 %v1556
    %1558 = vmatprep.subr.mxu0 0.0
    %v1559 = vand.u32 %v1012, 4294901760
    %1560 = vmatpush1.msra.mxu0 %v1559
    %1561 = vmatprep.subr.mxu0 0.0
    %1562 = vmatpush1.msra.mxu0 0.0
    %1563 = vmatprep.subr.mxu0 0.0
    %1564 = vmatpush1.msra.mxu0 0.0
    %1565 = vmatprep.subr.mxu0 0.0
    %1566 = vmatpush1.msra.mxu0 0.0
    %1567 = vmatprep.subr.mxu0 0.0
    %1568 = vmatpush1.msra.mxu0 0.0
    %1569 = vmatprep.subr.mxu0 0.0
    %1570 = vmatpush1.msra.mxu0 0.0
    %1571 = vmatprep.subr.mxu0 0.0
    %1572 = vmatpush1.msra.mxu0 0.0
    %1573 = vmatprep.subr.mxu0 0.0
    %1574 = vmatpush1.msra.mxu0 0.0
    %1575 = vmatprep.subr.mxu0 0.0
    %1576 = vmatpush1.msra.mxu0 0.0
    %1577 = vmatprep.subr.mxu0 0.0
    %1578 = vmatpush1.msra.mxu0 0.0
    %1579 = vmatprep.subr.mxu0 0.0
    %1580 = vmatpush1.msra.mxu0 0.0
    %1581 = vmatprep.subr.mxu0 0.0
    %1582 = vmatpush1.msra.mxu0 0.0
    %1583 = vmatprep.subr.mxu0 0.0
    %1584 = vmatpush1.msra.mxu0 0.0
    %1585 = vmatprep.subr.mxu0 0.0
    %1586 = vmatpush1.msra.mxu0 0.0
    %1587 = vmatprep.subr.mxu0 0.0
    %1588 = vmatpush1.msra.mxu0 0.0
    %1589 = vmatprep.subr.mxu0 0.0
    %1590 = vmatpush1.msra.mxu0 0.0
    %1591 = vmatprep.subr.mxu0 0.0
    %1592 = vmatpush1.msra.mxu0 0.0
    %1593 = vmatprep.subr.mxu0 0.0
    %1594 = vmatpush1.msra.mxu0 0.0
    %1595 = vmatprep.subr.mxu0 0.0
    %1596 = vmatpush1.msra.mxu0 0.0
    %1597 = vmatprep.subr.mxu0 0.0
    %1598 = vmatpush1.msra.mxu0 0.0
    %1599 = vmatprep.subr.mxu0 0.0
    %1600 = vmatpush1.msra.mxu0 0.0
    %1601 = vmatprep.subr.mxu0 0.0
    %1602 = vmatpush1.msra.mxu0 0.0
    %1603 = vmatprep.subr.mxu0 0.0
    %1604 = vmatpush1.msra.mxu0 0.0
    %1605 = vmatprep.subr.mxu0 0.0
    %1606 = vmatpush1.msra.mxu0 0.0
    %1607 = vmatprep.subr.mxu0 0.0
    %1608 = vmatpush1.msra.mxu0 0.0
    %1609 = vmatprep.mubr.f32.mxu0 0.0
    %v1610 = vand.u32 %v1071, 4294901760
    %v1611 = vsub.f32 %v1071, %v1610
    %v1612 = vand.u32 %v1611, 4294901760
    %1613 = vmatmul.mubr.f32.gmra.mrb[0].mxu0 %v1612
    %v1614 = vpop.f32.mrb[0].mxu0
    %v1615 = vadd.f32 %v1485, %v1614
    %v1616 = vpop.f32.mrb[0].mxu0
    %1617 = vmatprep.mubr.f32.mxu0 0.0
    %v1618 = vand.u32 %v1074, 4294901760
    %v1619 = vsub.f32 %v1074, %v1618
    %v1620 = vand.u32 %v1619, 4294901760
    %1621 = vmatmul.mubr.f32.gmra.mrb[0].mxu0 %v1620
    %v1622 = vpop.f32.mrb[0].mxu0
    %v1623 = vadd.f32 %v1492, %v1622
    %v1624 = vpop.f32.mrb[0].mxu0
    %1625 = vmatprep.mubr.f32.mxu0 0.0
    %v1626 = vand.u32 %v1077, 4294901760
    %v1627 = vsub.f32 %v1077, %v1626
    %v1628 = vand.u32 %v1627, 4294901760
    %1629 = vmatmul.mubr.f32.gmra.mrb[0].mxu0 %v1628
    %v1630 = vpop.f32.mrb[0].mxu0
    %v1631 = vadd.f32 %v1499, %v1630
    %v1632 = vpop.f32.mrb[0].mxu0
    %1633 = vmatprep.mubr.f32.mxu0 0.0
    %v1634 = vand.u32 %v1080, 4294901760
    %v1635 = vsub.f32 %v1080, %v1634
    %v1636 = vand.u32 %v1635, 4294901760
    %1637 = vmatmul.mubr.f32.gmra.mrb[0].mxu0 %v1636
    %v1638 = vpop.f32.mrb[0].mxu0
    %v1639 = vadd.f32 %v1506, %v1638
    %v1640 = vpop.f32.mrb[0].mxu0
    %1641 = vmatprep.mubr.f32.mxu0 0.0
    %v1642 = vand.u32 %v1083, 4294901760
    %v1643 = vsub.f32 %v1083, %v1642
    %v1644 = vand.u32 %v1643, 4294901760
    %1645 = vmatmul.mubr.f32.gmra.mrb[0].mxu0 %v1644
    %v1646 = vpop.f32.mrb[0].mxu0
    %v1647 = vadd.f32 %v1513, %v1646
    %v1648 = vpop.f32.mrb[0].mxu0
    %1649 = vmatprep.mubr.f32.mxu0 0.0
    %v1650 = vand.u32 %v1086, 4294901760
    %v1651 = vsub.f32 %v1086, %v1650
    %v1652 = vand.u32 %v1651, 4294901760
    %1653 = vmatmul.mubr.f32.gmra.mrb[0].mxu0 %v1652
    %v1654 = vpop.f32.mrb[0].mxu0
    %v1655 = vadd.f32 %v1520, %v1654
    %v1656 = vpop.f32.mrb[0].mxu0
    %1657 = vmatprep.mubr.f32.mxu0 0.0
    %v1658 = vand.u32 %v1089, 4294901760
    %v1659 = vsub.f32 %v1089, %v1658
    %v1660 = vand.u32 %v1659, 4294901760
    %1661 = vmatmul.mubr.f32.gmra.mrb[0].mxu0 %v1660
    %v1662 = vpop.f32.mrb[0].mxu0
    %v1663 = vadd.f32 %v1527, %v1662
    %v1664 = vpop.f32.mrb[0].mxu0
    %1665 = vmatprep.mubr.f32.mxu0 0.0
    %v1666 = vand.u32 %v1092, 4294901760
    %v1667 = vsub.f32 %v1092, %v1666
    %v1668 = vand.u32 %v1667, 4294901760
    %1669 = vmatmul.mubr.f32.gmra.mrb[0].mxu0 %v1668
    %v1670 = vpop.f32.mrb[0].mxu0
    %v1671 = vadd.f32 %v1534, %v1670
    %v1672 = vpop.f32.mrb[0].mxu0
    %1673 = vdwg.mxu0
    %1674 = vmatprep.subr.mxu0 0.0
    %v1675 = vand.u32 %v1005, 4294901760
    %v1676 = vsub.f32 %v1005, %v1675
    %v1677 = vand.u32 %v1676, 4294901760
    %1678 = vmatpush1.msra.mxu0 %v1677
    %1679 = vmatprep.subr.mxu0 0.0
    %v1680 = vand.u32 %v1006, 4294901760
    %v1681 = vsub.f32 %v1006, %v1680
    %v1682 = vand.u32 %v1681, 4294901760
    %1683 = vmatpush1.msra.mxu0 %v1682
    %1684 = vmatprep.subr.mxu0 0.0
    %v1685 = vand.u32 %v1007, 4294901760
    %v1686 = vsub.f32 %v1007, %v1685
    %v1687 = vand.u32 %v1686, 4294901760
    %1688 = vmatpush1.msra.mxu0 %v1687
    %1689 = vmatprep.subr.mxu0 0.0
    %v1690 = vand.u32 %v1008, 4294901760
    %v1691 = vsub.f32 %v1008, %v1690
    %v1692 = vand.u32 %v1691, 4294901760
    %1693 = vmatpush1.msra.mxu0 %v1692
    %1694 = vmatprep.subr.mxu0 0.0
    %v1695 = vand.u32 %v1009, 4294901760
    %v1696 = vsub.f32 %v1009, %v1695
    %v1697 = vand.u32 %v1696, 4294901760
    %1698 = vmatpush1.msra.mxu0 %v1697
    %1699 = vmatprep.subr.mxu0 0.0
    %v1700 = vand.u32 %v1010, 4294901760
    %v1701 = vsub.f32 %v1010, %v1700
    %v1702 = vand.u32 %v1701, 4294901760
    %1703 = vmatpush1.msra.mxu0 %v1702
    %1704 = vmatprep.subr.mxu0 0.0
    %v1705 = vand.u32 %v1011, 4294901760
    %v1706 = vsub.f32 %v1011, %v1705
    %v1707 = vand.u32 %v1706, 4294901760
    %1708 = vmatpush1.msra.mxu0 %v1707
    %1709 = vmatprep.subr.mxu0 0.0
    %v1710 = vand.u32 %v1012, 4294901760
    %v1711 = vsub.f32 %v1012, %v1710
    %v1712 = vand.u32 %v1711, 4294901760
    %1713 = vmatpush1.msra.mxu0 %v1712
    %1714 = vmatprep.subr.mxu0 0.0
    %1715 = vmatpush1.msra.mxu0 0.0
    %1716 = vmatprep.subr.mxu0 0.0
    %1717 = vmatpush1.msra.mxu0 0.0
    %1718 = vmatprep.subr.mxu0 0.0
    %1719 = vmatpush1.msra.mxu0 0.0
    %1720 = vmatprep.subr.mxu0 0.0
    %1721 = vmatpush1.msra.mxu0 0.0
    %1722 = vmatprep.subr.mxu0 0.0
    %1723 = vmatpush1.msra.mxu0 0.0
    %1724 = vmatprep.subr.mxu0 0.0
    %1725 = vmatpush1.msra.mxu0 0.0
    %1726 = vmatprep.subr.mxu0 0.0
    %1727 = vmatpush1.msra.mxu0 0.0
    %1728 = vmatprep.subr.mxu0 0.0
    %1729 = vmatpush1.msra.mxu0 0.0
    %1730 = vmatprep.subr.mxu0 0.0
    %1731 = vmatpush1.msra.mxu0 0.0
    %1732 = vmatprep.subr.mxu0 0.0
    %1733 = vmatpush1.msra.mxu0 0.0
    %1734 = vmatprep.subr.mxu0 0.0
    %1735 = vmatpush1.msra.mxu0 0.0
    %1736 = vmatprep.subr.mxu0 0.0
    %1737 = vmatpush1.msra.mxu0 0.0
    %1738 = vmatprep.subr.mxu0 0.0
    %1739 = vmatpush1.msra.mxu0 0.0
    %1740 = vmatprep.subr.mxu0 0.0
    %1741 = vmatpush1.msra.mxu0 0.0
    %1742 = vmatprep.subr.mxu0 0.0
    %1743 = vmatpush1.msra.mxu0 0.0
    %1744 = vmatprep.subr.mxu0 0.0
    %1745 = vmatpush1.msra.mxu0 0.0
    %1746 = vmatprep.subr.mxu0 0.0
    %1747 = vmatpush1.msra.mxu0 0.0
    %1748 = vmatprep.subr.mxu0 0.0
    %1749 = vmatpush1.msra.mxu0 0.0
    %1750 = vmatprep.subr.mxu0 0.0
    %1751 = vmatpush1.msra.mxu0 0.0
    %1752 = vmatprep.subr.mxu0 0.0
    %1753 = vmatpush1.msra.mxu0 0.0
    %1754 = vmatprep.subr.mxu0 0.0
    %1755 = vmatpush1.msra.mxu0 0.0
    %1756 = vmatprep.subr.mxu0 0.0
    %1757 = vmatpush1.msra.mxu0 0.0
    %1758 = vmatprep.subr.mxu0 0.0
    %1759 = vmatpush1.msra.mxu0 0.0
    %1760 = vmatprep.subr.mxu0 0.0
    %1761 = vmatpush1.msra.mxu0 0.0
    %1762 = vmatprep.mubr.f32.mxu0 0.0
    %v1763 = vand.u32 %v1071, 4294901760
    %1764 = vmatmul.mubr.f32.gmra.mrb[0].mxu0 %v1763
    %v1765 = vpop.f32.mrb[0].mxu0
    %v1766 = vadd.f32 %v1615, %v1765
    %v1767 = vpop.f32.mrb[0].mxu0
    %1768 = vmatprep.mubr.f32.mxu0 0.0
    %v1769 = vand.u32 %v1074, 4294901760
    %1770 = vmatmul.mubr.f32.gmra.mrb[0].mxu0 %v1769
    %v1771 = vpop.f32.mrb[0].mxu0
    %v1772 = vadd.f32 %v1623, %v1771
    %v1773 = vpop.f32.mrb[0].mxu0
    %1774 = vmatprep.mubr.f32.mxu0 0.0
    %v1775 = vand.u32 %v1077, 4294901760
    %1776 = vmatmul.mubr.f32.gmra.mrb[0].mxu0 %v1775
    %v1777 = vpop.f32.mrb[0].mxu0
    %v1778 = vadd.f32 %v1631, %v1777
    %v1779 = vpop.f32.mrb[0].mxu0
    %1780 = vmatprep.mubr.f32.mxu0 0.0
    %v1781 = vand.u32 %v1080, 4294901760
    %1782 = vmatmul.mubr.f32.gmra.mrb[0].mxu0 %v1781
    %v1783 = vpop.f32.mrb[0].mxu0
    %v1784 = vadd.f32 %v1639, %v1783
    %v1785 = vpop.f32.mrb[0].mxu0
    %1786 = vmatprep.mubr.f32.mxu0 0.0
    %v1787 = vand.u32 %v1083, 4294901760
    %1788 = vmatmul.mubr.f32.gmra.mrb[0].mxu0 %v1787
    %v1789 = vpop.f32.mrb[0].mxu0
    %v1790 = vadd.f32 %v1647, %v1789
    %v1791 = vpop.f32.mrb[0].mxu0
    %1792 = vmatprep.mubr.f32.mxu0 0.0
    %v1793 = vand.u32 %v1086, 4294901760
    %1794 = vmatmul.mubr.f32.gmra.mrb[0].mxu0 %v1793
    %v1795 = vpop.f32.mrb[0].mxu0
    %v1796 = vadd.f32 %v1655, %v1795
    %v1797 = vpop.f32.mrb[0].mxu0
    %1798 = vmatprep.mubr.f32.mxu0 0.0
    %v1799 = vand.u32 %v1089, 4294901760
    %1800 = vmatmul.mubr.f32.gmra.mrb[0].mxu0 %v1799
    %v1801 = vpop.f32.mrb[0].mxu0
    %v1802 = vadd.f32 %v1663, %v1801
    %v1803 = vpop.f32.mrb[0].mxu0
    %1804 = vmatprep.mubr.f32.mxu0 0.0
    %v1805 = vand.u32 %v1092, 4294901760
    %1806 = vmatmul.mubr.f32.gmra.mrb[0].mxu0 %v1805
    %v1807 = vpop.f32.mrb[0].mxu0
    %v1808 = vadd.f32 %v1671, %v1807
    %v1809 = vpop.f32.mrb[0].mxu0
    %1810 = vdwg.mxu0
    %1811 = vmatprep.subr.mxu0 0.0
    %v1812 = vand.u32 %v1005, 4294901760
    %1813 = vmatpush1.msra.mxu0 %v1812
    %1814 = vmatprep.subr.mxu0 0.0
    %v1815 = vand.u32 %v1006, 4294901760
    %1816 = vmatpush1.msra.mxu0 %v1815
    %1817 = vmatprep.subr.mxu0 0.0
    %v1818 = vand.u32 %v1007, 4294901760
    %1819 = vmatpush1.msra.mxu0 %v1818
    %1820 = vmatprep.subr.mxu0 0.0
    %v1821 = vand.u32 %v1008, 4294901760
    %1822 = vmatpush1.msra.mxu0 %v1821
    %1823 = vmatprep.subr.mxu0 0.0
    %v1824 = vand.u32 %v1009, 4294901760
    %1825 = vmatpush1.msra.mxu0 %v1824
    %1826 = vmatprep.subr.mxu0 0.0
    %v1827 = vand.u32 %v1010, 4294901760
    %1828 = vmatpush1.msra.mxu0 %v1827
    %1829 = vmatprep.subr.mxu0 0.0
    %v1830 = vand.u32 %v1011, 4294901760
    %1831 = vmatpush1.msra.mxu0 %v1830
    %1832 = vmatprep.subr.mxu0 0.0
    %v1833 = vand.u32 %v1012, 4294901760
    %1834 = vmatpush1.msra.mxu0 %v1833
    %1835 = vmatprep.subr.mxu0 0.0
    %1836 = vmatpush1.msra.mxu0 0.0
    %1837 = vmatprep.subr.mxu0 0.0
    %1838 = vmatpush1.msra.mxu0 0.0
    %1839 = vmatprep.subr.mxu0 0.0
    %1840 = vmatpush1.msra.mxu0 0.0
    %1841 = vmatprep.subr.mxu0 0.0
    %1842 = vmatpush1.msra.mxu0 0.0
    %1843 = vmatprep.subr.mxu0 0.0
    %1844 = vmatpush1.msra.mxu0 0.0
    %1845 = vmatprep.subr.mxu0 0.0
    %1846 = vmatpush1.msra.mxu0 0.0
    %1847 = vmatprep.subr.mxu0 0.0
    %1848 = vmatpush1.msra.mxu0 0.0
    %1849 = vmatprep.subr.mxu0 0.0
    %1850 = vmatpush1.msra.mxu0 0.0
    %1851 = vmatprep.subr.mxu0 0.0
    %1852 = vmatpush1.msra.mxu0 0.0
    %1853 = vmatprep.subr.mxu0 0.0
    %1854 = vmatpush1.msra.mxu0 0.0
    %1855 = vmatprep.subr.mxu0 0.0
    %1856 = vmatpush1.msra.mxu0 0.0
    %1857 = vmatprep.subr.mxu0 0.0
    %1858 = vmatpush1.msra.mxu0 0.0
    %1859 = vmatprep.subr.mxu0 0.0
    %1860 = vmatpush1.msra.mxu0 0.0
    %1861 = vmatprep.subr.mxu0 0.0
    %1862 = vmatpush1.msra.mxu0 0.0
    %1863 = vmatprep.subr.mxu0 0.0
    %1864 = vmatpush1.msra.mxu0 0.0
    %1865 = vmatprep.subr.mxu0 0.0
    %1866 = vmatpush1.msra.mxu0 0.0
    %1867 = vmatprep.subr.mxu0 0.0
    %1868 = vmatpush1.msra.mxu0 0.0
    %1869 = vmatprep.subr.mxu0 0.0
    %1870 = vmatpush1.msra.mxu0 0.0
    %1871 = vmatprep.subr.mxu0 0.0
    %1872 = vmatpush1.msra.mxu0 0.0
    %1873 = vmatprep.subr.mxu0 0.0
    %1874 = vmatpush1.msra.mxu0 0.0
    %1875 = vmatprep.subr.mxu0 0.0
    %1876 = vmatpush1.msra.mxu0 0.0
    %1877 = vmatprep.subr.mxu0 0.0
    %1878 = vmatpush1.msra.mxu0 0.0
    %1879 = vmatprep.subr.mxu0 0.0
    %1880 = vmatpush1.msra.mxu0 0.0
    %1881 = vmatprep.subr.mxu0 0.0
    %1882 = vmatpush1.msra.mxu0 0.0
    %1883 = vmatprep.mubr.f32.mxu0 0.0
    %v1884 = vand.u32 %v1071, 4294901760
    %1885 = vmatmul.mubr.f32.gmra.mrb[0].mxu0 %v1884
    %v1886 = vpop.f32.mrb[0].mxu0
    %v1887 = vadd.f32 %v1766, %v1886
    %v1888 = vpop.f32.mrb[0].mxu0
    %1889 = vmatprep.mubr.f32.mxu0 0.0
    %v1890 = vand.u32 %v1074, 4294901760
    %1891 = vmatmul.mubr.f32.gmra.mrb[0].mxu0 %v1890
    %v1892 = vpop.f32.mrb[0].mxu0
    %v1893 = vadd.f32 %v1772, %v1892
    %v1894 = vpop.f32.mrb[0].mxu0
    %1895 = vmatprep.mubr.f32.mxu0 0.0
    %v1896 = vand.u32 %v1077, 4294901760
    %1897 = vmatmul.mubr.f32.gmra.mrb[0].mxu0 %v1896
    %v1898 = vpop.f32.mrb[0].mxu0
    %v1899 = vadd.f32 %v1778, %v1898
    %v1900 = vpop.f32.mrb[0].mxu0
    %1901 = vmatprep.mubr.f32.mxu0 0.0
    %v1902 = vand.u32 %v1080, 4294901760
    %1903 = vmatmul.mubr.f32.gmra.mrb[0].mxu0 %v1902
    %v1904 = vpop.f32.mrb[0].mxu0
    %v1905 = vadd.f32 %v1784, %v1904
    %v1906 = vpop.f32.mrb[0].mxu0
    %1907 = vmatprep.mubr.f32.mxu0 0.0
    %v1908 = vand.u32 %v1083, 4294901760
    %1909 = vmatmul.mubr.f32.gmra.mrb[0].mxu0 %v1908
    %v1910 = vpop.f32.mrb[0].mxu0
    %v1911 = vadd.f32 %v1790, %v1910
    %v1912 = vpop.f32.mrb[0].mxu0
    %1913 = vmatprep.mubr.f32.mxu0 0.0
    %v1914 = vand.u32 %v1086, 4294901760
    %1915 = vmatmul.mubr.f32.gmra.mrb[0].mxu0 %v1914
    %v1916 = vpop.f32.mrb[0].mxu0
    %v1917 = vadd.f32 %v1796, %v1916
    %v1918 = vpop.f32.mrb[0].mxu0
    %1919 = vmatprep.mubr.f32.mxu0 0.0
    %v1920 = vand.u32 %v1089, 4294901760
    %1921 = vmatmul.mubr.f32.gmra.mrb[0].mxu0 %v1920
    %v1922 = vpop.f32.mrb[0].mxu0
    %v1923 = vadd.f32 %v1802, %v1922
    %v1924 = vpop.f32.mrb[0].mxu0
    %1925 = vmatprep.mubr.f32.mxu0 0.0
    %v1926 = vand.u32 %v1092, 4294901760
    %1927 = vmatmul.mubr.f32.gmra.mrb[0].mxu0 %v1926
    %v1928 = vpop.f32.mrb[0].mxu0
    %v1929 = vadd.f32 %v1808, %v1928
    %v1930 = vpop.f32.mrb[0].mxu0
    %1931 = vdwg.mxu0
    %v1932 = vtanh.pop %v1887
    %v1933 = vtanh.pop %v1893
    %v1934 = vtanh.pop %v1899
    %v1935 = vtanh.pop %v1905
    %v1936 = vtanh.pop %v1911
    %v1937 = vtanh.pop %v1917
    %v1938 = vtanh.pop %v1923
    %v1939 = vtanh.pop %v1929
    %v1940 = vld [vmem:[%s6] sm:$0xff]
    %v1941 = vld [vmem:[%s7] sm:$0xff]
    %1943 = vset.pattern.permute.xlu0 0
    %1944 = vperm.xlu0 %1943, %v1941
    %v1945 = vpop.permute.xlu0 %1944
    %v1948 = vsel %vm1069, %v1940, 0
    %1950 = vmatprep.subr.mxu0 0.0
    %v1951 = vand.u32 %v1932, 4294901760
    %1952 = vmatpush1.msra.mxu0 %v1951
    %1953 = vmatprep.subr.mxu0 0.0
    %v1954 = vand.u32 %v1933, 4294901760
    %1955 = vmatpush1.msra.mxu0 %v1954
    %1956 = vmatprep.subr.mxu0 0.0
    %v1957 = vand.u32 %v1934, 4294901760
    %1958 = vmatpush1.msra.mxu0 %v1957
    %1959 = vmatprep.subr.mxu0 0.0
    %v1960 = vand.u32 %v1935, 4294901760
    %1961 = vmatpush1.msra.mxu0 %v1960
    %1962 = vmatprep.subr.mxu0 0.0
    %v1963 = vand.u32 %v1936, 4294901760
    %1964 = vmatpush1.msra.mxu0 %v1963
    %1965 = vmatprep.subr.mxu0 0.0
    %v1966 = vand.u32 %v1937, 4294901760
    %1967 = vmatpush1.msra.mxu0 %v1966
    %1968 = vmatprep.subr.mxu0 0.0
    %v1969 = vand.u32 %v1938, 4294901760
    %1970 = vmatpush1.msra.mxu0 %v1969
    %1971 = vmatprep.subr.mxu0 0.0
    %v1972 = vand.u32 %v1939, 4294901760
    %1973 = vmatpush1.msra.mxu0 %v1972
    %1974 = vmatprep.subr.mxu0 0.0
    %1975 = vmatpush1.msra.mxu0 0.0
    %1976 = vmatprep.subr.mxu0 0.0
    %1977 = vmatpush1.msra.mxu0 0.0
    %1978 = vmatprep.subr.mxu0 0.0
    %1979 = vmatpush1.msra.mxu0 0.0
    %1980 = vmatprep.subr.mxu0 0.0
    %1981 = vmatpush1.msra.mxu0 0.0
    %1982 = vmatprep.subr.mxu0 0.0
    %1983 = vmatpush1.msra.mxu0 0.0
    %1984 = vmatprep.subr.mxu0 0.0
    %1985 = vmatpush1.msra.mxu0 0.0
    %1986 = vmatprep.subr.mxu0 0.0
    %1987 = vmatpush1.msra.mxu0 0.0
    %1988 = vmatprep.subr.mxu0 0.0
    %1989 = vmatpush1.msra.mxu0 0.0
    %1990 = vmatprep.subr.mxu0 0.0
    %1991 = vmatpush1.msra.mxu0 0.0
    %1992 = vmatprep.subr.mxu0 0.0
    %1993 = vmatpush1.msra.mxu0 0.0
    %1994 = vmatprep.subr.mxu0 0.0
    %1995 = vmatpush1.msra.mxu0 0.0
    %1996 = vmatprep.subr.mxu0 0.0
    %1997 = vmatpush1.msra.mxu0 0.0
    %1998 = vmatprep.subr.mxu0 0.0
    %1999 = vmatpush1.msra.mxu0 0.0
    %2000 = vmatprep.subr.mxu0 0.0
    %2001 = vmatpush1.msra.mxu0 0.0
    %2002 = vmatprep.subr.mxu0 0.0
    %2003 = vmatpush1.msra.mxu0 0.0
    %2004 = vmatprep.subr.mxu0 0.0
    %2005 = vmatpush1.msra.mxu0 0.0
    %2006 = vmatprep.subr.mxu0 0.0
    %2007 = vmatpush1.msra.mxu0 0.0
    %2008 = vmatprep.subr.mxu0 0.0
    %2009 = vmatpush1.msra.mxu0 0.0
    %2010 = vmatprep.subr.mxu0 0.0
    %2011 = vmatpush1.msra.mxu0 0.0
    %2012 = vmatprep.subr.mxu0 0.0
    %2013 = vmatpush1.msra.mxu0 0.0
    %2014 = vmatprep.subr.mxu0 0.0
    %2015 = vmatpush1.msra.mxu0 0.0
    %2016 = vmatprep.subr.mxu0 0.0
    %2017 = vmatpush1.msra.mxu0 0.0
    %2018 = vmatprep.subr.mxu0 0.0
    %2019 = vmatpush1.msra.mxu0 0.0
    %2020 = vmatprep.subr.mxu0 0.0
    %2021 = vmatpush1.msra.mxu0 0.0
    %2022 = vmatprep.mubr.f32.mxu0 0.0
    %v2023 = vand.u32 %v1948, 4294901760
    %v2024 = vsub.f32 %v1948, %v2023
    %v2025 = vand.u32 %v2024, 4294901760
    %v2026 = vsub.f32 %v2024, %v2025
    %v2027 = vand.u32 %v2026, 4294901760
    %2028 = vmatmul.mubr.f32.gmra.mrb[0].mxu0 %v2027
    %v2029 = vpop.f32.mrb[0].mxu0
    %v2030 = vadd.f32 %v1945, %v2029
    %v2031 = vpop.f32.mrb[0].mxu0
    %2032 = vdwg.mxu0
    %2033 = vmatprep.subr.mxu0 0.0
    %v2034 = vand.u32 %v1932, 4294901760
    %v2035 = vsub.f32 %v1932, %v2034
    %v2036 = vand.u32 %v2035, 4294901760
    %v2037 = vsub.f32 %v2035, %v2036
    %v2038 = vand.u32 %v2037, 4294901760
    %2039 = vmatpush1.msra.mxu0 %v2038
    %2040 = vmatprep.subr.mxu0 0.0
    %v2041 = vand.u32 %v1933, 4294901760
    %v2042 = vsub.f32 %v1933, %v2041
    %v2043 = vand.u32 %v2042, 4294901760
    %v2044 = vsub.f32 %v2042, %v2043
    %v2045 = vand.u32 %v2044, 4294901760
    %2046 = vmatpush1.msra.mxu0 %v2045
    %2047 = vmatprep.subr.mxu0 0.0
    %v2048 = vand.u32 %v1934, 4294901760
    %v2049 = vsub.f32 %v1934, %v2048
    %v2050 = vand.u32 %v2049, 4294901760
    %v2051 = vsub.f32 %v2049, %v2050
    %v2052 = vand.u32 %v2051, 4294901760
    %2053 = vmatpush1.msra.mxu0 %v2052
    %2054 = vmatprep.subr.mxu0 0.0
    %v2055 = vand.u32 %v1935, 4294901760
    %v2056 = vsub.f32 %v1935, %v2055
    %v2057 = vand.u32 %v2056, 4294901760
    %v2058 = vsub.f32 %v2056, %v2057
    %v2059 = vand.u32 %v2058, 4294901760
    %2060 = vmatpush1.msra.mxu0 %v2059
    %2061 = vmatprep.subr.mxu0 0.0
    %v2062 = vand.u32 %v1936, 4294901760
    %v2063 = vsub.f32 %v1936, %v2062
    %v2064 = vand.u32 %v2063, 4294901760
    %v2065 = vsub.f32 %v2063, %v2064
    %v2066 = vand.u32 %v2065, 4294901760
    %2067 = vmatpush1.msra.mxu0 %v2066
    %2068 = vmatprep.subr.mxu0 0.0
    %v2069 = vand.u32 %v1937, 4294901760
    %v2070 = vsub.f32 %v1937, %v2069
    %v2071 = vand.u32 %v2070, 4294901760
    %v2072 = vsub.f32 %v2070, %v2071
    %v2073 = vand.u32 %v2072, 4294901760
    %2074 = vmatpush1.msra.mxu0 %v2073
    %2075 = vmatprep.subr.mxu0 0.0
    %v2076 = vand.u32 %v1938, 4294901760
    %v2077 = vsub.f32 %v1938, %v2076
    %v2078 = vand.u32 %v2077, 4294901760
    %v2079 = vsub.f32 %v2077, %v2078
    %v2080 = vand.u32 %v2079, 4294901760
    %2081 = vmatpush1.msra.mxu0 %v2080
    %2082 = vmatprep.subr.mxu0 0.0
    %v2083 = vand.u32 %v1939, 4294901760
    %v2084 = vsub.f32 %v1939, %v2083
    %v2085 = vand.u32 %v2084, 4294901760
    %v2086 = vsub.f32 %v2084, %v2085
    %v2087 = vand.u32 %v2086, 4294901760
    %2088 = vmatpush1.msra.mxu0 %v2087
    %2089 = vmatprep.subr.mxu0 0.0
    %2090 = vmatpush1.msra.mxu0 0.0
    %2091 = vmatprep.subr.mxu0 0.0
    %2092 = vmatpush1.msra.mxu0 0.0
    %2093 = vmatprep.subr.mxu0 0.0
    %2094 = vmatpush1.msra.mxu0 0.0
    %2095 = vmatprep.subr.mxu0 0.0
    %2096 = vmatpush1.msra.mxu0 0.0
    %2097 = vmatprep.subr.mxu0 0.0
    %2098 = vmatpush1.msra.mxu0 0.0
    %2099 = vmatprep.subr.mxu0 0.0
    %2100 = vmatpush1.msra.mxu0 0.0
    %2101 = vmatprep.subr.mxu0 0.0
    %2102 = vmatpush1.msra.mxu0 0.0
    %2103 = vmatprep.subr.mxu0 0.0
    %2104 = vmatpush1.msra.mxu0 0.0
    %2105 = vmatprep.subr.mxu0 0.0
    %2106 = vmatpush1.msra.mxu0 0.0
    %2107 = vmatprep.subr.mxu0 0.0
    %2108 = vmatpush1.msra.mxu0 0.0
    %2109 = vmatprep.subr.mxu0 0.0
    %2110 = vmatpush1.msra.mxu0 0.0
    %2111 = vmatprep.subr.mxu0 0.0
    %2112 = vmatpush1.msra.mxu0 0.0
    %2113 = vmatprep.subr.mxu0 0.0
    %2114 = vmatpush1.msra.mxu0 0.0
    %2115 = vmatprep.subr.mxu0 0.0
    %2116 = vmatpush1.msra.mxu0 0.0
    %2117 = vmatprep.subr.mxu0 0.0
    %2118 = vmatpush1.msra.mxu0 0.0
    %2119 = vmatprep.subr.mxu0 0.0
    %2120 = vmatpush1.msra.mxu0 0.0
    %2121 = vmatprep.subr.mxu0 0.0
    %2122 = vmatpush1.msra.mxu0 0.0
    %2123 = vmatprep.subr.mxu0 0.0
    %2124 = vmatpush1.msra.mxu0 0.0
    %2125 = vmatprep.subr.mxu0 0.0
    %2126 = vmatpush1.msra.mxu0 0.0
    %2127 = vmatprep.subr.mxu0 0.0
    %2128 = vmatpush1.msra.mxu0 0.0
    %2129 = vmatprep.subr.mxu0 0.0
    %2130 = vmatpush1.msra.mxu0 0.0
    %2131 = vmatprep.subr.mxu0 0.0
    %2132 = vmatpush1.msra.mxu0 0.0
    %2133 = vmatprep.subr.mxu0 0.0
    %2134 = vmatpush1.msra.mxu0 0.0
    %2135 = vmatprep.subr.mxu0 0.0
    %2136 = vmatpush1.msra.mxu0 0.0
    %2137 = vmatprep.mubr.f32.mxu0 0.0
    %v2138 = vand.u32 %v1948, 4294901760
    %2139 = vmatmul.mubr.f32.gmra.mrb[0].mxu0 %v2138
    %v2140 = vpop.f32.mrb[0].mxu0
    %v2141 = vadd.f32 %v2030, %v2140
    %v2142 = vpop.f32.mrb[0].mxu0
    %2143 = vdwg.mxu0
    %2144 = vmatprep.subr.mxu0 0.0
    %v2145 = vand.u32 %v1932, 4294901760
    %v2146 = vsub.f32 %v1932, %v2145
    %2147 = vmatpush1.msra.mxu0 %v2146
    %2148 = vmatprep.subr.mxu0 0.0
    %v2149 = vand.u32 %v1933, 4294901760
    %v2150 = vsub.f32 %v1933, %v2149
    %2151 = vmatpush1.msra.mxu0 %v2150
    %2152 = vmatprep.subr.mxu0 0.0
    %v2153 = vand.u32 %v1934, 4294901760
    %v2154 = vsub.f32 %v1934, %v2153
    %2155 = vmatpush1.msra.mxu0 %v2154
    %2156 = vmatprep.subr.mxu0 0.0
    %v2157 = vand.u32 %v1935, 4294901760
    %v2158 = vsub.f32 %v1935, %v2157
    %2159 = vmatpush1.msra.mxu0 %v2158
    %2160 = vmatprep.subr.mxu0 0.0
    %v2161 = vand.u32 %v1936, 4294901760
    %v2162 = vsub.f32 %v1936, %v2161
    %2163 = vmatpush1.msra.mxu0 %v2162
    %2164 = vmatprep.subr.mxu0 0.0
    %v2165 = vand.u32 %v1937, 4294901760
    %v2166 = vsub.f32 %v1937, %v2165
    %2167 = vmatpush1.msra.mxu0 %v2166
    %2168 = vmatprep.subr.mxu0 0.0
    %v2169 = vand.u32 %v1938, 4294901760
    %v2170 = vsub.f32 %v1938, %v2169
    %2171 = vmatpush1.msra.mxu0 %v2170
    %2172 = vmatprep.subr.mxu0 0.0
    %v2173 = vand.u32 %v1939, 4294901760
    %v2174 = vsub.f32 %v1939, %v2173
    %2175 = vmatpush1.msra.mxu0 %v2174
    %2176 = vmatprep.subr.mxu0 0.0
    %2177 = vmatpush1.msra.mxu0 0.0
    %2178 = vmatprep.subr.mxu0 0.0
    %2179 = vmatpush1.msra.mxu0 0.0
    %2180 = vmatprep.subr.mxu0 0.0
    %2181 = vmatpush1.msra.mxu0 0.0
    %2182 = vmatprep.subr.mxu0 0.0
    %2183 = vmatpush1.msra.mxu0 0.0
    %2184 = vmatprep.subr.mxu0 0.0
    %2185 = vmatpush1.msra.mxu0 0.0
    %2186 = vmatprep.subr.mxu0 0.0
    %2187 = vmatpush1.msra.mxu0 0.0
    %2188 = vmatprep.subr.mxu0 0.0
    %2189 = vmatpush1.msra.mxu0 0.0
    %2190 = vmatprep.subr.mxu0 0.0
    %2191 = vmatpush1.msra.mxu0 0.0
    %2192 = vmatprep.subr.mxu0 0.0
    %2193 = vmatpush1.msra.mxu0 0.0
    %2194 = vmatprep.subr.mxu0 0.0
    %2195 = vmatpush1.msra.mxu0 0.0
    %2196 = vmatprep.subr.mxu0 0.0
    %2197 = vmatpush1.msra.mxu0 0.0
    %2198 = vmatprep.subr.mxu0 0.0
    %2199 = vmatpush1.msra.mxu0 0.0
    %2200 = vmatprep.subr.mxu0 0.0
    %2201 = vmatpush1.msra.mxu0 0.0
    %2202 = vmatprep.subr.mxu0 0.0
    %2203 = vmatpush1.msra.mxu0 0.0
    %2204 = vmatprep.subr.mxu0 0.0
    %2205 = vmatpush1.msra.mxu0 0.0
    %2206 = vmatprep.subr.mxu0 0.0
    %2207 = vmatpush1.msra.mxu0 0.0
    %2208 = vmatprep.subr.mxu0 0.0
    %2209 = vmatpush1.msra.mxu0 0.0
    %2210 = vmatprep.subr.mxu0 0.0
    %2211 = vmatpush1.msra.mxu0 0.0
    %2212 = vmatprep.subr.mxu0 0.0
    %2213 = vmatpush1.msra.mxu0 0.0
    %2214 = vmatprep.subr.mxu0 0.0
    %2215 = vmatpush1.msra.mxu0 0.0
    %2216 = vmatprep.subr.mxu0 0.0
    %2217 = vmatpush1.msra.mxu0 0.0
    %2218 = vmatprep.subr.mxu0 0.0
    %2219 = vmatpush1.msra.mxu0 0.0
    %2220 = vmatprep.subr.mxu0 0.0
    %2221 = vmatpush1.msra.mxu0 0.0
    %2222 = vmatprep.subr.mxu0 0.0
    %2223 = vmatpush1.msra.mxu0 0.0
    %2224 = vmatprep.mubr.f32.mxu0 0.0
    %v2225 = vand.u32 %v1948, 4294901760
    %v2226 = vsub.f32 %v1948, %v2225
    %2227 = vmatmul.mubr.f32.gmra.mrb[0].mxu0 %v2226
    %v2228 = vpop.f32.mrb[0].mxu0
    %v2229 = vadd.f32 %v2141, %v2228
    %v2230 = vpop.f32.mrb[0].mxu0
    %2231 = vdwg.mxu0
    %2232 = vmatprep.subr.mxu0 0.0
    %v2233 = vand.u32 %v1932, 4294901760
    %2234 = vmatpush1.msra.mxu0 %v2233
    %2235 = vmatprep.subr.mxu0 0.0
    %v2236 = vand.u32 %v1933, 4294901760
    %2237 = vmatpush1.msra.mxu0 %v2236
    %2238 = vmatprep.subr.mxu0 0.0
    %v2239 = vand.u32 %v1934, 4294901760
    %2240 = vmatpush1.msra.mxu0 %v2239
    %2241 = vmatprep.subr.mxu0 0.0
    %v2242 = vand.u32 %v1935, 4294901760
    %2243 = vmatpush1.msra.mxu0 %v2242
    %2244 = vmatprep.subr.mxu0 0.0
    %v2245 = vand.u32 %v1936, 4294901760
    %2246 = vmatpush1.msra.mxu0 %v2245
    %2247 = vmatprep.subr.mxu0 0.0
    %v2248 = vand.u32 %v1937, 4294901760
    %2249 = vmatpush1.msra.mxu0 %v2248
    %2250 = vmatprep.subr.mxu0 0.0
    %v2251 = vand.u32 %v1938, 4294901760
    %2252 = vmatpush1.msra.mxu0 %v2251
    %2253 = vmatprep.subr.mxu0 0.0
    %v2254 = vand.u32 %v1939, 4294901760
    %2255 = vmatpush1.msra.mxu0 %v2254
    %2256 = vmatprep.subr.mxu0 0.0
    %2257 = vmatpush1.msra.mxu0 0.0
    %2258 = vmatprep.subr.mxu0 0.0
    %2259 = vmatpush1.msra.mxu0 0.0
    %2260 = vmatprep.subr.mxu0 0.0
    %2261 = vmatpush1.msra.mxu0 0.0
    %2262 = vmatprep.subr.mxu0 0.0
    %2263 = vmatpush1.msra.mxu0 0.0
    %2264 = vmatprep.subr.mxu0 0.0
    %2265 = vmatpush1.msra.mxu0 0.0
    %2266 = vmatprep.subr.mxu0 0.0
    %2267 = vmatpush1.msra.mxu0 0.0
    %2268 = vmatprep.subr.mxu0 0.0
    %2269 = vmatpush1.msra.mxu0 0.0
    %2270 = vmatprep.subr.mxu0 0.0
    %2271 = vmatpush1.msra.mxu0 0.0
    %2272 = vmatprep.subr.mxu0 0.0
    %2273 = vmatpush1.msra.mxu0 0.0
    %2274 = vmatprep.subr.mxu0 0.0
    %2275 = vmatpush1.msra.mxu0 0.0
    %2276 = vmatprep.subr.mxu0 0.0
    %2277 = vmatpush1.msra.mxu0 0.0
    %2278 = vmatprep.subr.mxu0 0.0
    %2279 = vmatpush1.msra.mxu0 0.0
    %2280 = vmatprep.subr.mxu0 0.0
    %2281 = vmatpush1.msra.mxu0 0.0
    %2282 = vmatprep.subr.mxu0 0.0
    %2283 = vmatpush1.msra.mxu0 0.0
    %2284 = vmatprep.subr.mxu0 0.0
    %2285 = vmatpush1.msra.mxu0 0.0
    %2286 = vmatprep.subr.mxu0 0.0
    %2287 = vmatpush1.msra.mxu0 0.0
    %2288 = vmatprep.subr.mxu0 0.0
    %2289 = vmatpush1.msra.mxu0 0.0
    %2290 = vmatprep.subr.mxu0 0.0
    %2291 = vmatpush1.msra.mxu0 0.0
    %2292 = vmatprep.subr.mxu0 0.0
    %2293 = vmatpush1.msra.mxu0 0.0
    %2294 = vmatprep.subr.mxu0 0.0
    %2295 = vmatpush1.msra.mxu0 0.0
    %2296 = vmatprep.subr.mxu0 0.0
    %2297 = vmatpush1.msra.mxu0 0.0
    %2298 = vmatprep.subr.mxu0 0.0
    %2299 = vmatpush1.msra.mxu0 0.0
    %2300 = vmatprep.subr.mxu0 0.0
    %2301 = vmatpush1.msra.mxu0 0.0
    %2302 = vmatprep.subr.mxu0 0.0
    %2303 = vmatpush1.msra.mxu0 0.0
    %2304 = vmatprep.mubr.f32.mxu0 0.0
    %v2305 = vand.u32 %v1948, 4294901760
    %v2306 = vsub.f32 %v1948, %v2305
    %v2307 = vand.u32 %v2306, 4294901760
    %2308 = vmatmul.mubr.f32.gmra.mrb[0].mxu0 %v2307
    %v2309 = vpop.f32.mrb[0].mxu0
    %v2310 = vadd.f32 %v2229, %v2309
    %v2311 = vpop.f32.mrb[0].mxu0
    %2312 = vdwg.mxu0
    %2313 = vmatprep.subr.mxu0 0.0
    %v2314 = vand.u32 %v1932, 4294901760
    %v2315 = vsub.f32 %v1932, %v2314
    %v2316 = vand.u32 %v2315, 4294901760
    %2317 = vmatpush1.msra.mxu0 %v2316
    %2318 = vmatprep.subr.mxu0 0.0
    %v2319 = vand.u32 %v1933, 4294901760
    %v2320 = vsub.f32 %v1933, %v2319
    %v2321 = vand.u32 %v2320, 4294901760
    %2322 = vmatpush1.msra.mxu0 %v2321
    %2323 = vmatprep.subr.mxu0 0.0
    %v2324 = vand.u32 %v1934, 4294901760
    %v2325 = vsub.f32 %v1934, %v2324
    %v2326 = vand.u32 %v2325, 4294901760
    %2327 = vmatpush1.msra.mxu0 %v2326
    %2328 = vmatprep.subr.mxu0 0.0
    %v2329 = vand.u32 %v1935, 4294901760
    %v2330 = vsub.f32 %v1935, %v2329
    %v2331 = vand.u32 %v2330, 4294901760
    %2332 = vmatpush1.msra.mxu0 %v2331
    %2333 = vmatprep.subr.mxu0 0.0
    %v2334 = vand.u32 %v1936, 4294901760
    %v2335 = vsub.f32 %v1936, %v2334
    %v2336 = vand.u32 %v2335, 4294901760
    %2337 = vmatpush1.msra.mxu0 %v2336
    %2338 = vmatprep.subr.mxu0 0.0
    %v2339 = vand.u32 %v1937, 4294901760
    %v2340 = vsub.f32 %v1937, %v2339
    %v2341 = vand.u32 %v2340, 4294901760
    %2342 = vmatpush1.msra.mxu0 %v2341
    %2343 = vmatprep.subr.mxu0 0.0
    %v2344 = vand.u32 %v1938, 4294901760
    %v2345 = vsub.f32 %v1938, %v2344
    %v2346 = vand.u32 %v2345, 4294901760
    %2347 = vmatpush1.msra.mxu0 %v2346
    %2348 = vmatprep.subr.mxu0 0.0
    %v2349 = vand.u32 %v1939, 4294901760
    %v2350 = vsub.f32 %v1939, %v2349
    %v2351 = vand.u32 %v2350, 4294901760
    %2352 = vmatpush1.msra.mxu0 %v2351
    %2353 = vmatprep.subr.mxu0 0.0
    %2354 = vmatpush1.msra.mxu0 0.0
    %2355 = vmatprep.subr.mxu0 0.0
    %2356 = vmatpush1.msra.mxu0 0.0
    %2357 = vmatprep.subr.mxu0 0.0
    %2358 = vmatpush1.msra.mxu0 0.0
    %2359 = vmatprep.subr.mxu0 0.0
    %2360 = vmatpush1.msra.mxu0 0.0
    %2361 = vmatprep.subr.mxu0 0.0
    %2362 = vmatpush1.msra.mxu0 0.0
    %2363 = vmatprep.subr.mxu0 0.0
    %2364 = vmatpush1.msra.mxu0 0.0
    %2365 = vmatprep.subr.mxu0 0.0
    %2366 = vmatpush1.msra.mxu0 0.0
    %2367 = vmatprep.subr.mxu0 0.0
    %2368 = vmatpush1.msra.mxu0 0.0
    %2369 = vmatprep.subr.mxu0 0.0
    %2370 = vmatpush1.msra.mxu0 0.0
    %2371 = vmatprep.subr.mxu0 0.0
    %2372 = vmatpush1.msra.mxu0 0.0
    %2373 = vmatprep.subr.mxu0 0.0
    %2374 = vmatpush1.msra.mxu0 0.0
    %2375 = vmatprep.subr.mxu0 0.0
    %2376 = vmatpush1.msra.mxu0 0.0
    %2377 = vmatprep.subr.mxu0 0.0
    %2378 = vmatpush1.msra.mxu0 0.0
    %2379 = vmatprep.subr.mxu0 0.0
    %2380 = vmatpush1.msra.mxu0 0.0
    %2381 = vmatprep.subr.mxu0 0.0
    %2382 = vmatpush1.msra.mxu0 0.0
    %2383 = vmatprep.subr.mxu0 0.0
    %2384 = vmatpush1.msra.mxu0 0.0
    %2385 = vmatprep.subr.mxu0 0.0
    %2386 = vmatpush1.msra.mxu0 0.0
    %2387 = vmatprep.subr.mxu0 0.0
    %2388 = vmatpush1.msra.mxu0 0.0
    %2389 = vmatprep.subr.mxu0 0.0
    %2390 = vmatpush1.msra.mxu0 0.0
    %2391 = vmatprep.subr.mxu0 0.0
    %2392 = vmatpush1.msra.mxu0 0.0
    %2393 = vmatprep.subr.mxu0 0.0
    %2394 = vmatpush1.msra.mxu0 0.0
    %2395 = vmatprep.subr.mxu0 0.0
    %2396 = vmatpush1.msra.mxu0 0.0
    %2397 = vmatprep.subr.mxu0 0.0
    %2398 = vmatpush1.msra.mxu0 0.0
    %2399 = vmatprep.subr.mxu0 0.0
    %2400 = vmatpush1.msra.mxu0 0.0
    %2401 = vmatprep.mubr.f32.mxu0 0.0
    %v2402 = vand.u32 %v1948, 4294901760
    %2403 = vmatmul.mubr.f32.gmra.mrb[0].mxu0 %v2402
    %v2404 = vpop.f32.mrb[0].mxu0
    %v2405 = vadd.f32 %v2310, %v2404
    %v2406 = vpop.f32.mrb[0].mxu0
    %2407 = vdwg.mxu0
    %2408 = vmatprep.subr.mxu0 0.0
    %v2409 = vand.u32 %v1932, 4294901760
    %2410 = vmatpush1.msra.mxu0 %v2409
    %2411 = vmatprep.subr.mxu0 0.0
    %v2412 = vand.u32 %v1933, 4294901760
    %2413 = vmatpush1.msra.mxu0 %v2412
    %2414 = vmatprep.subr.mxu0 0.0
    %v2415 = vand.u32 %v1934, 4294901760
    %2416 = vmatpush1.msra.mxu0 %v2415
    %2417 = vmatprep.subr.mxu0 0.0
    %v2418 = vand.u32 %v1935, 4294901760
    %2419 = vmatpush1.msra.mxu0 %v2418
    %2420 = vmatprep.subr.mxu0 0.0
    %v2421 = vand.u32 %v1936, 4294901760
    %2422 = vmatpush1.msra.mxu0 %v2421
    %2423 = vmatprep.subr.mxu0 0.0
    %v2424 = vand.u32 %v1937, 4294901760
    %2425 = vmatpush1.msra.mxu0 %v2424
    %2426 = vmatprep.subr.mxu0 0.0
    %v2427 = vand.u32 %v1938, 4294901760
    %2428 = vmatpush1.msra.mxu0 %v2427
    %2429 = vmatprep.subr.mxu0 0.0
    %v2430 = vand.u32 %v1939, 4294901760
    %2431 = vmatpush1.msra.mxu0 %v2430
    %2432 = vmatprep.subr.mxu0 0.0
    %2433 = vmatpush1.msra.mxu0 0.0
    %2434 = vmatprep.subr.mxu0 0.0
    %2435 = vmatpush1.msra.mxu0 0.0
    %2436 = vmatprep.subr.mxu0 0.0
    %2437 = vmatpush1.msra.mxu0 0.0
    %2438 = vmatprep.subr.mxu0 0.0
    %2439 = vmatpush1.msra.mxu0 0.0
    %2440 = vmatprep.subr.mxu0 0.0
    %2441 = vmatpush1.msra.mxu0 0.0
    %2442 = vmatprep.subr.mxu0 0.0
    %2443 = vmatpush1.msra.mxu0 0.0
    %2444 = vmatprep.subr.mxu0 0.0
    %2445 = vmatpush1.msra.mxu0 0.0
    %2446 = vmatprep.subr.mxu0 0.0
    %2447 = vmatpush1.msra.mxu0 0.0
    %2448 = vmatprep.subr.mxu0 0.0
    %2449 = vmatpush1.msra.mxu0 0.0
    %2450 = vmatprep.subr.mxu0 0.0
    %2451 = vmatpush1.msra.mxu0 0.0
    %2452 = vmatprep.subr.mxu0 0.0
    %2453 = vmatpush1.msra.mxu0 0.0
    %2454 = vmatprep.subr.mxu0 0.0
    %2455 = vmatpush1.msra.mxu0 0.0
    %2456 = vmatprep.subr.mxu0 0.0
    %2457 = vmatpush1.msra.mxu0 0.0
    %2458 = vmatprep.subr.mxu0 0.0
    %2459 = vmatpush1.msra.mxu0 0.0
    %2460 = vmatprep.subr.mxu0 0.0
    %2461 = vmatpush1.msra.mxu0 0.0
    %2462 = vmatprep.subr.mxu0 0.0
    %2463 = vmatpush1.msra.mxu0 0.0
    %2464 = vmatprep.subr.mxu0 0.0
    %2465 = vmatpush1.msra.mxu0 0.0
    %2466 = vmatprep.subr.mxu0 0.0
    %2467 = vmatpush1.msra.mxu0 0.0
    %2468 = vmatprep.subr.mxu0 0.0
    %2469 = vmatpush1.msra.mxu0 0.0
    %2470 = vmatprep.subr.mxu0 0.0
    %2471 = vmatpush1.msra.mxu0 0.0
    %2472 = vmatprep.subr.mxu0 0.0
    %2473 = vmatpush1.msra.mxu0 0.0
    %2474 = vmatprep.subr.mxu0 0.0
    %2475 = vmatpush1.msra.mxu0 0.0
    %2476 = vmatprep.subr.mxu0 0.0
    %2477 = vmatpush1.msra.mxu0 0.0
    %2478 = vmatprep.subr.mxu0 0.0
    %2479 = vmatpush1.msra.mxu0 0.0
    %2480 = vmatprep.mubr.f32.mxu0 0.0
    %v2481 = vand.u32 %v1948, 4294901760
    %2482 = vmatmul.mubr.f32.gmra.mrb[0].mxu0 %v2481
    %v2483 = vpop.f32.mrb[0].mxu0
    %v2484 = vadd.f32 %v2405, %v2483
    %v2485 = vpop.f32.mrb[0].mxu0
    %2486 = vdwg.mxu0
    %v2487 = vld [vmem:[%s0] sm:$0x3f]
    %v2488 = vmul.f32 %v2487, 0.5
    %v2490 = vrot.slane %v2488, 2
    %v2492 = vadd.f32 %v2487, %v2490
    %v2494 = vrot.slane %v2484, 6
    %v2496 = vadd.f32 %v2492, %v2494
    %v2497 = vrot.slane %v2484, 1
    %v2499 = vadd.f32 %v2484, %v2497
    %v2500 = vrot.slane %v2484, 3
    %v2502 = vadd.f32 %v2484, %v2500
    %v2503 = vsub.f32 %v2484, %v2500
    %v2504 = vmul.f32 %v2503, %v2503
    %v2505 = vmul.f32 %v2499, %v2499
    %v2507 = vrot.slane %v2505, 1
    %v2509 = vadd.f32 %v2504, %v2507
    %v2510 = vrsqrt.pop %v2509
    %v2511 = vmul.f32 %v2509, %v2510
    %vm2512 = vcmp.eq.f32.partialorder %v2509, inf
    %v2513 = vsel %vm2512, %v2509, %v2511
    %vm2514 = vcmp.eq.f32.partialorder %v2509, 0.0
    %v2515 = vand.u32 %v2509, 2147483648
    %v2516 = vsel %vm2514, %v2515, %v2513
    %v2517 = vadd.f32 %v2502, %v2516
    %v2518 = vmul.f32 %v2517, 1.442695
    %v2519 = vpow.pop %v2518
    %v2520 = vsub.f32 %v2502, %v2516
    %v2521 = vmul.f32 %v2520, 1.442695
    %v2522 = vpow.pop %v2521
    %v2523 = vadd.f32 %v2519, %v2522
    %v2524 = vmul.f32 %v2523, 0.5
    %v2525 = vsub.f32 %v2519, %v2522
    %v2526 = vmul.f32 %v2525, 0.5
    %vm2527 = vcmp.lt.f32.partialorder %v2516, 0.001
    %v2528 = vsel %vm2527, 1.0, %v2516
    %v2529 = vrcp.pop %v2528
    %v2530 = vmul.f32 %v2526, %v2529
    %v2531 = vsel %vm2527, %v2524, %v2530
    %v2532 = vmul.f32 %v2503, %v2531
    %v2533 = vadd.f32 %v2524, %v2532
    %v2535 = vrot.slane %v2531, 7
    %v2537 = vmul.f32 %v2499, %v2535
    %v2538 = vsub.f32 %v2524, %v2532
    %v2540 = vrot.slane %v2487, 6
    %v2542 = vmul.f32 %v2533, %v2540
    %v2543 = vmul.f32 %v2537, %v2540
    %v2545 = vrot.slane %v2543, 1
    %v2547 = vadd.f32 %v2542, %v2545
    %v2548 = vadd.f32 %v2547, %v2496
    %v2549 = vrot.slane %v2487, 5
    %v2551 = vmul.f32 %v2537, %v2549
    %v2552 = vrot.slane %v2487, 7
    %v2554 = vmul.f32 %v2538, %v2552
    %v2556 = vrot.slane %v2554, 7
    %v2558 = vadd.f32 %v2551, %v2556
    %v2559 = vadd.f32 %v2558, %v2496
    %2560 = vst [vmem:[#allocation2 - $0x2] sm:$0x4] %v2548
    %2561 = vst [vmem:[#allocation2 - $0x2] sm:$0x8] %v2559
    %2562 = vst [vmem:[#allocation2] sm:$0xc] %v2496
    %2563 = vst [vmem:[#allocation2 + $0x2] sm:$0x4] %v2533
    %2564 = vst [vmem:[#allocation2 + $0x2] sm:$0x8] %v2537
    %2565 = vst [vmem:[#allocation2 + $0x3] sm:$0x8] %v2537
    %2566 = vst [vmem:[#allocation2 + $0x5] sm:$0x4] %v2538
    // Predicated region
    $region34: #{tpu_custom_call.1} parent=1 // pred_check
      _
    $region35: #{tpu_custom_call.1} parent=1 // pred_check_branch
      %2568 = sbr.rel (0) target = $region37
    $region36: #{tpu_custom_call.1} parent=1 // pred_region
      %s2570 = ssub.s32 128, 128
      %2571 = vsyncadd [#allocation3], %s2570
      %s2573 = sshll.u32 [#allocation2], 4
      %s2574 = int_to_ptr.vmem [resolvable:$true] %s2573
      %2576 = dma.vmem_to_hbm [thread:$0]  %s2574, 128, %s8, [#allocation3]
    $region37: #{tpu_custom_call.1} parent=1 // pred_fallthru
      _
    // Predicated region
    $region38: #{tpu_custom_call.1} parent=1 // pred_check
      _
    $region39: #{tpu_custom_call.1} parent=1 // pred_check_branch
      %2578 = sbr.rel (0) target = $region41
    $region40: #{tpu_custom_call.1} parent=1 // pred_region
      %2579 = dma.done [#allocation3], 128
    $region41: #{tpu_custom_call.1} parent=1 // pred_fallthru
      _
    %2580 = vsyncpa [#allocation3], 1

</llo_original>
